<compile_context>
chip_gen: v5e
topology: v5e:2x2
jax: 0.10.0
libtpu: 0.0.40
codegen_flags: <defaults>
</compile_context>

<pallas_src>
import functools
import math

import jax
import jax.numpy as jnp
from jax import lax
from jax.experimental import pallas as pl
from jax.experimental.pallas import tpu as pltpu


_LANE = 128
_SUBLANE = 8


def _round_up(x, m):
    return (x + m - 1) // m * m


def _vmem_limit_bytes():
    """Generation-aware scoped-VMEM limit: ~3/4 of physical VMEM.

    128 MiB parts (v5e/v6e) -> 96 MiB, 64 MiB parts (v7x) -> 48 MiB.
    Falls back to a conservative 48 MiB if the query is unavailable.
    """
    cap = 64 * 1024 * 1024
    try:
        info = pltpu.get_tpu_info()
        cap = int(getattr(info, "vmem_capacity_bytes", cap))
    except Exception:
        pass
    return max((cap * 3) // 4, 32 * 1024 * 1024)


def _pick_batch_tile(b_pad, t_len, in_sz, h_dim, seq_out, out_pad, budget_bytes):
    """Largest sublane-aligned batch tile whose working set fits the budget."""
    f32 = 4
    gh = 4 * h_dim
    w_bytes = (in_sz * gh + h_dim * gh + gh) * f32
    if not seq_out:
        w_bytes += (h_dim * out_pad + out_pad) * f32

    def need(tb):
        gx = 2 * t_len * tb * gh * f32          # gx scratch + matmul temp (conservative)
        x_in = 2 * t_len * tb * in_sz * f32     # double-buffered input block
        out = (2 * t_len * tb * h_dim * f32) if seq_out else (2 * tb * out_pad * f32)
        hc = 2 * tb * h_dim * f32               # h / c carries
        return w_bytes + gx + x_in + out + hc

    cands = sorted({d for d in (256, 128, 64, 32, 16, 8) if b_pad % d == 0} | {b_pad},
                   reverse=True)
    fitting = [tb for tb in cands if need(tb) <= budget_bytes]
    if not fitting:
        return cands[-1]  # smallest divisor; rely on vmem_limit headroom
    # Prefer >=2 grid steps (v7x: shards the "parallel" batch grid across both
    # TensorCores) but only if the tile stays big enough to feed the MXU.
    for tb in fitting:
        if b_pad // tb >= 2 and tb >= 128:
            return tb
    return fitting[0]


# -----------------------------------------------------------------------------
# Fused LSTM layer kernel: hoisted input projection + serial recurrence
# (+ optional fused Linear/Sigmoid head on the final hidden state).
# Gate column order is (i, f, o, g).
# -----------------------------------------------------------------------------
def _lstm_core(x_ref, wih_ref, bias_ref, whh_ref, gx_ref, h_ref, c_ref,
               seq_out_ref, *, unroll):
    t_len, tb, in_sz = x_ref.shape
    h_dim = whh_ref.shape[0]

    # Hoisted input projection: ONE MXU matmul over all timesteps of the tile,
    # result stays in single-buffered VMEM scratch (no HBM round trip).
    # tb % 8 == 0, so the (T, tb, in) <-> (T*tb, in) reshapes are layout no-ops.
    x_flat = x_ref[...].reshape(t_len * tb, in_sz)
    gx = jnp.dot(x_flat, wih_ref[...], preferred_element_type=jnp.float32)
    gx = gx + bias_ref[...]
    gx_ref[...] = gx.reshape(t_len, tb, 4 * h_dim)

    h_ref[...] = jnp.zeros_like(h_ref)
    c_ref[...] = jnp.zeros_like(c_ref)
    whh = whh_ref[...]
    lane_aligned = (h_dim % _LANE) == 0

    def body(t, carry):
        h = h_ref[...]
        c = c_ref[...]
        gates = gx_ref[t] + jnp.dot(h, whh, preferred_element_type=jnp.float32)
        if lane_aligned:
            sig = jax.nn.sigmoid(gates[:, : 3 * h_dim])     # contiguous i|f|o slab
        else:
            # H not lane-aligned: sigmoid the whole (vreg-aligned) 4H slab and
            # slice afterwards instead of a mid-vreg slice before the EUP.
            sig = jax.nn.sigmoid(gates)
        i_g = sig[:, 0:h_dim]
        f_g = sig[:, h_dim:2 * h_dim]
        o_g = sig[:, 2 * h_dim:3 * h_dim]
        g_g = jnp.tanh(gates[:, 3 * h_dim:])
        c_new = f_g * c + i_g * g_g
        h_new = o_g * jnp.tanh(c_new)
        h_ref[...] = h_new
        c_ref[...] = c_new
        if seq_out_ref is not None:
            seq_out_ref[t] = h_new.astype(seq_out_ref.dtype)
        return carry

    # Bounded unroll: LLO scheduling visibility without code/vreg blowup at
    # realistic sequence lengths.  h/c live in VMEM scratch, not the carry.
    lax.fori_loop(0, t_len, body, 0, unroll=unroll)


def _lstm_seq_kernel(x_ref, wih_ref, bias_ref, whh_ref, out_ref,
                     gx_ref, h_ref, c_ref, *, unroll):
    _lstm_core(x_ref, wih_ref, bias_ref, whh_ref, gx_ref, h_ref, c_ref,
               out_ref, unroll=unroll)


def _lstm_head_kernel(x_ref, wih_ref, bias_ref, whh_ref, wlin_ref, blin_ref,
                      out_ref, gx_ref, h_ref, c_ref, *, unroll):
    _lstm_core(x_ref, wih_ref, bias_ref, whh_ref, gx_ref, h_ref, c_ref,
               None, unroll=unroll)
    # Fused classifier head on the final hidden state only (lane-padded O).
    y = jnp.dot(h_ref[...], wlin_ref[...], preferred_element_type=jnp.float32)
    y = y + blin_ref[...]
    out_ref[...] = jax.nn.sigmoid(y).astype(out_ref.dtype)


def lstm_layer(x_tm, wih_t, bias, whh_t, *, head, vmem_limit):
    """One LSTM layer on time-major input x_tm: (T, B_pad, in), B_pad % 8 == 0.

    head=None           -> returns the full hidden sequence (T, B_pad, H).
    head=(w_t_pad, b_p) -> returns sigmoid(h_T @ w + b), shape (B_pad, O_pad).
    """
    t_len, b_pad, in_sz = x_tm.shape
    h_dim = whh_t.shape[0]
    gh = 4 * h_dim
    seq_out = head is None
    out_pad = 0 if seq_out else head[0].shape[1]
    budget = max(vmem_limit - 2 * 1024 * 1024, vmem_limit // 2)
    tb = _pick_batch_tile(b_pad, t_len, in_sz, h_dim, seq_out, out_pad, budget)
    unroll = int(min(t_len, 8))

    in_specs = [
        pl.BlockSpec((t_len, tb, in_sz), lambda b: (0, b, 0)),
        pl.BlockSpec((in_sz, gh), lambda b: (0, 0)),     # W_ih^T stays resident
        pl.BlockSpec((1, gh), lambda b: (0, 0)),         # b_ih + b_hh
        pl.BlockSpec((h_dim, gh), lambda b: (0, 0)),     # W_hh^T stays resident
    ]
    scratch = [
        pltpu.VMEM((t_len, tb, gh), jnp.float32),        # gx (single-buffered)
        pltpu.VMEM((tb, h_dim), jnp.float32),            # h carry
        pltpu.VMEM((tb, h_dim), jnp.float32),            # c carry
    ]
    if seq_out:
        kernel = functools.partial(_lstm_seq_kernel, unroll=unroll)
        out_shape = jax.ShapeDtypeStruct((t_len, b_pad, h_dim), jnp.float32)
        out_spec = pl.BlockSpec((t_len, tb, h_dim), lambda b: (0, b, 0))
        args = (x_tm, wih_t, bias, whh_t)
    else:
        wlin_t, blin = head
        kernel = functools.partial(_lstm_head_kernel, unroll=unroll)
        out_shape = jax.ShapeDtypeStruct((b_pad, out_pad), jnp.float32)
        out_spec = pl.BlockSpec((tb, out_pad), lambda b: (b, 0))
        in_specs += [
            pl.BlockSpec((h_dim, out_pad), lambda b: (0, 0)),
            pl.BlockSpec((1, out_pad), lambda b: (0, 0)),
        ]
        args = (x_tm, wih_t, bias, whh_t, wlin_t, blin)

    return pl.pallas_call(
        kernel,
        out_shape=out_shape,
        grid=(b_pad // tb,),
        in_specs=in_specs,
        out_specs=out_spec,
        scratch_shapes=scratch,
        compiler_params=pltpu.CompilerParams(
            dimension_semantics=("parallel",),
            vmem_limit_bytes=vmem_limit,
        ),
    )(*args)


# -----------------------------------------------------------------------------
# Parameter construction (PyTorch shapes/init range, gates reordered i,f,o,g)
# -----------------------------------------------------------------------------
def _reorder_ifgo_to_ifog(w):
    # PyTorch packs gates (i, f, g, o) along the leading 4H axis; reorder to
    # (i, f, o, g) so sigmoid gates form one contiguous slab in the kernel.
    h = w.shape[0] // 4
    i, f, g, o = (w[k * h:(k + 1) * h] for k in range(4))
    return jnp.concatenate([i, f, o, g], axis=0)


def init_params(key, input_size, hidden_size, num_layers, output_dim):
    bound = 1.0 / math.sqrt(hidden_size)
    out_pad = _round_up(output_dim, _LANE)
    params = {"lstm": [], "linear": {}}
    for layer in range(num_layers):
        in_sz = input_size if layer == 0 else hidden_size
        key, k1, k2, k3, k4 = jax.random.split(key, 5)
        w_ih = jax.random.uniform(k1, (4 * hidden_size, in_sz),
                                  jnp.float32, -bound, bound)
        w_hh = jax.random.uniform(k2, (4 * hidden_size, hidden_size),
                                  jnp.float32, -bound, bound)
        b_ih = jax.random.uniform(k3, (4 * hidden_size,), jnp.float32, -bound, bound)
        b_hh = jax.random.uniform(k4, (4 * hidden_size,), jnp.float32, -bound, bound)
        w_ih = _reorder_ifgo_to_ifog(w_ih)
        w_hh = _reorder_ifgo_to_ifog(w_hh)
        bias = _reorder_ifgo_to_ifog((b_ih + b_hh)[:, None])[:, 0]
        params["lstm"].append({
            "w_ih_t": w_ih.T,                 # (in_sz, 4H), columns (i,f,o,g)
            "w_hh_t": w_hh.T,                 # (H, 4H)
            "bias": bias[None, :],            # (1, 4H) = b_ih + b_hh
        })
    key, k5, k6 = jax.random.split(key, 3)
    w_lin = jax.random.uniform(k5, (output_dim, hidden_size), jnp.float32, -bound, bound)
    b_lin = jax.random.uniform(k6, (output_dim,), jnp.float32, -bound, bound)
    # Lane-pad the head so the fused epilogue's store is lane-dense.
    w_t_pad = jnp.zeros((hidden_size, out_pad), jnp.float32).at[:, :output_dim].set(w_lin.T)
    b_pad = jnp.zeros((1, out_pad), jnp.float32).at[:, :output_dim].set(b_lin[None, :])
    params["linear"] = {"w_t_pad": w_t_pad, "b_pad": b_pad}
    return params


# -----------------------------------------------------------------------------
# Forward pass mirroring SentimentLSTM.forward (eval mode)
# -----------------------------------------------------------------------------
@functools.partial(jax.jit, static_argnames=("output_dim",))
def sentiment_lstm_forward(x, params, output_dim):
    # x: (B, T, I) float32 (batch_first, like the PyTorch module)
    B, T, _ = x.shape
    vmem_limit = _vmem_limit_bytes()
    b_pad = _round_up(max(B, _SUBLANE), _SUBLANE)

    # One cheap transpose of the raw input; everything downstream stays
    # time-major.  Batch is padded to a sublane multiple so all stores are
    # full-sublane and in-kernel reshapes are layout no-ops.
    h_seq = jnp.transpose(x, (1, 0, 2))  # (T, B, I)
    if b_pad != B:
        h_seq = jnp.pad(h_seq, ((0, 0), (0, b_pad - B), (0, 0)))

    lstm = params["lstm"]
    for p in lstm[:-1]:
        h_seq = lstm_layer(h_seq, p["w_ih_t"], p["bias"], p["w_hh_t"],
                           head=None, vmem_limit=vmem_limit)

    # TODO(synk): nn.Dropout(0.3) is identity in eval mode; training-mode
    # Bernoulli masking (pltpu.prng_*) is not implemented here.
    p = lstm[-1]
    head_out = lstm_layer(h_seq, p["w_ih_t"], p["bias"], p["w_hh_t"],
                          head=(params["linear"]["w_t_pad"],
                                params["linear"]["b_pad"]),
                          vmem_limit=vmem_limit)   # (B_pad, O_pad)

    # Reference: sig(linear(drop.reshape(-1,H))).reshape(B,-1)[:, -1] selects
    # (timestep T-1, output column output_dim-1); only that slice is computed.
    return head_out[:B, output_dim - 1]  # (B,)


if __name__ == "__main__":
    input_size = 16
    hidden_size = 32
    num_layers = 2
    output_dim = 1
    batch = 2
    seq = 8

    key = jax.random.PRNGKey(0)
    key, xk, pk = jax.random.split(key, 3)
    x = jax.random.normal(xk, (batch, seq, input_size), jnp.float32)
    params = init_params(pk, input_size, hidden_size, num_layers, output_dim)

    out = sentiment_lstm_forward(x, params, output_dim=output_dim)
    jax.block_until_ready(out)
    assert out.shape == (batch,), out.shape
    assert bool(jnp.all(jnp.isfinite(out)))
    print("KERNEL_OK")
</pallas_src>

<mosaic_0001>
module attributes {stable_mosaic.version = 11 : i64} {
  func.func @_lstm_seq_kernel(%arg0: i32, %arg1: memref<8x8x16xf32, #tpu.memory_space<vmem>>, %arg2: memref<16x128xf32, #tpu.memory_space<vmem>>, %arg3: memref<1x128xf32, #tpu.memory_space<vmem>>, %arg4: memref<32x128xf32, #tpu.memory_space<vmem>>, %arg5: memref<8x8x32xf32, #tpu.memory_space<vmem>>, %arg6: memref<8x8x128xf32, #tpu.memory_space<vmem>>, %arg7: memref<8x32xf32, #tpu.memory_space<vmem>>, %arg8: memref<8x32xf32, #tpu.memory_space<vmem>>) attributes {dimension_semantics = [#tpu.dimension_semantics<parallel>], iteration_bounds = array<i64: 1>, scalar_prefetch = 0 : i64, scratch_operands = 3 : i64, tpu.core_type = #tpu.core_type<tc>, window_params = [{transform_indices = @transform_0, window_bounds = array<i64: 8, 8, 16>}, {pipeline_mode = #tpu.pipeline_mode<synchronous>, transform_indices = @transform_1, window_bounds = array<i64: 16, 128>}, {pipeline_mode = #tpu.pipeline_mode<synchronous>, transform_indices = @transform_2, window_bounds = array<i64: 1, 128>}, {pipeline_mode = #tpu.pipeline_mode<synchronous>, transform_indices = @transform_3, window_bounds = array<i64: 32, 128>}, {transform_indices = @transform_4, window_bounds = array<i64: 8, 8, 32>}]} {
    %c0 = arith.constant 0 : index
    %c0_0 = arith.constant 0 : index
    %c0_1 = arith.constant 0 : index
    %0 = vector.load %arg1[%c0, %c0_0, %c0_1] : memref<8x8x16xf32, #tpu.memory_space<vmem>>, vector<8x8x16xf32>
    %1 = vector.shape_cast %0 : vector<8x8x16xf32> to vector<64x16xf32>
    %c0_2 = arith.constant 0 : index
    %c0_3 = arith.constant 0 : index
    %2 = vector.load %arg2[%c0_2, %c0_3] : memref<16x128xf32, #tpu.memory_space<vmem>>, vector<16x128xf32>
    %cst = arith.constant dense<0.000000e+00> : vector<64x128xf32>
    %3 = tpu.matmul %1, %2, %cst {dimension_numbers = #tpu.dot_dimension_numbers<[1], [0], [0], [1], [0, 0, 1, 1], [], []>} : vector<64x16xf32>, vector<16x128xf32>, vector<64x128xf32> -> vector<64x128xf32>
    %c0_4 = arith.constant 0 : index
    %c0_5 = arith.constant 0 : index
    %4 = vector.load %arg3[%c0_4, %c0_5] : memref<1x128xf32, #tpu.memory_space<vmem>>, vector<1x128xf32>
    %5 = vector.broadcast %4 : vector<1x128xf32> to vector<64x128xf32>
    %6 = arith.addf %3, %5 : vector<64x128xf32>
    %7 = vector.shape_cast %6 : vector<64x128xf32> to vector<8x8x128xf32>
    %c0_6 = arith.constant 0 : index
    %c0_7 = arith.constant 0 : index
    %c0_8 = arith.constant 0 : index
    %8 = vector.load %arg6[%c0_6, %c0_7, %c0_8] : memref<8x8x128xf32, #tpu.memory_space<vmem>>, vector<8x8x128xf32>
    tpu.vector_store %arg6[%c0_6, %c0_7, %c0_8], %7 {strides = array<i32>} : memref<8x8x128xf32, #tpu.memory_space<vmem>>, vector<8x8x128xf32>,
    %cst_9 = arith.constant 0.000000e+00 : f32
    %9 = vector.broadcast %cst_9 : f32 to vector<8x32xf32>
    %c0_10 = arith.constant 0 : index
    %c0_11 = arith.constant 0 : index
    %10 = vector.load %arg7[%c0_10, %c0_11] : memref<8x32xf32, #tpu.memory_space<vmem>>, vector<8x32xf32>
    tpu.vector_store %arg7[%c0_10, %c0_11], %9 {strides = array<i32>} : memref<8x32xf32, #tpu.memory_space<vmem>>, vector<8x32xf32>,
    %cst_12 = arith.constant 0.000000e+00 : f32
    %11 = vector.broadcast %cst_12 : f32 to vector<8x32xf32>
    %c0_13 = arith.constant 0 : index
    %c0_14 = arith.constant 0 : index
    %12 = vector.load %arg8[%c0_13, %c0_14] : memref<8x32xf32, #tpu.memory_space<vmem>>, vector<8x32xf32>
    tpu.vector_store %arg8[%c0_13, %c0_14], %11 {strides = array<i32>} : memref<8x32xf32, #tpu.memory_space<vmem>>, vector<8x32xf32>,
    %c0_15 = arith.constant 0 : index
    %c0_16 = arith.constant 0 : index
    %13 = vector.load %arg4[%c0_15, %c0_16] : memref<32x128xf32, #tpu.memory_space<vmem>>, vector<32x128xf32>
    %c0_i32 = arith.constant 0 : i32
    %c0_17 = arith.constant 0 : index
    %c0_18 = arith.constant 0 : index
    %14 = vector.load %arg7[%c0_17, %c0_18] : memref<8x32xf32, #tpu.memory_space<vmem>>, vector<8x32xf32>
    %c0_19 = arith.constant 0 : index
    %c0_20 = arith.constant 0 : index
    %15 = vector.load %arg8[%c0_19, %c0_20] : memref<8x32xf32, #tpu.memory_space<vmem>>, vector<8x32xf32>
    %16 = arith.index_cast %c0_i32 : i32 to index
    %c0_21 = arith.constant 0 : index
    %c0_22 = arith.constant 0 : index
    %17 = vector.load %arg6[%16, %c0_21, %c0_22] : memref<8x8x128xf32, #tpu.memory_space<vmem>>, vector<1x8x128xf32>
    %18 = vector.shape_cast %17 : vector<1x8x128xf32> to vector<8x128xf32>
    %cst_23 = arith.constant dense<0.000000e+00> : vector<8x128xf32>
    %19 = tpu.matmul %14, %13, %cst_23 {dimension_numbers = #tpu.dot_dimension_numbers<[1], [0], [0], [1], [0, 0, 1, 1], [], []>} : vector<8x32xf32>, vector<32x128xf32>, vector<8x128xf32> -> vector<8x128xf32>
    %20 = arith.addf %18, %19 : vector<8x128xf32>
    %21 = arith.negf %20 : vector<8x128xf32>
    %22 = math.exp %21 : vector<8x128xf32>
    %cst_24 = arith.constant 1.000000e+00 : f32
    %23 = vector.broadcast %cst_24 : f32 to vector<8x128xf32>
    %24 = arith.addf %23, %22 : vector<8x128xf32>
    %25 = arith.divf %23, %24 : vector<8x128xf32>
    %26 = vector.extract_strided_slice %25 {offsets = [0, 0], sizes = [8, 32], strides = [1, 1]} : vector<8x128xf32> to vector<8x32xf32>
    %27 = vector.extract_strided_slice %25 {offsets = [0, 32], sizes = [8, 32], strides = [1, 1]} : vector<8x128xf32> to vector<8x32xf32>
    %28 = vector.extract_strided_slice %25 {offsets = [0, 64], sizes = [8, 32], strides = [1, 1]} : vector<8x128xf32> to vector<8x32xf32>
    %29 = vector.extract_strided_slice %20 {offsets = [0, 96], sizes = [8, 32], strides = [1, 1]} : vector<8x128xf32> to vector<8x32xf32>
    %30 = math.tanh %29 : vector<8x32xf32>
    %31 = arith.mulf %27, %15 : vector<8x32xf32>
    %32 = arith.mulf %26, %30 : vector<8x32xf32>
    %33 = arith.addf %31, %32 : vector<8x32xf32>
    %34 = math.tanh %33 : vector<8x32xf32>
    %35 = arith.mulf %28, %34 : vector<8x32xf32>
    %c0_25 = arith.constant 0 : index
    %c0_26 = arith.constant 0 : index
    %36 = vector.load %arg7[%c0_25, %c0_26] : memref<8x32xf32, #tpu.memory_space<vmem>>, vector<8x32xf32>
    tpu.vector_store %arg7[%c0_25, %c0_26], %35 {strides = array<i32>} : memref<8x32xf32, #tpu.memory_space<vmem>>, vector<8x32xf32>,
    %c0_27 = arith.constant 0 : index
    %c0_28 = arith.constant 0 : index
    %37 = vector.load %arg8[%c0_27, %c0_28] : memref<8x32xf32, #tpu.memory_space<vmem>>, vector<8x32xf32>
    tpu.vector_store %arg8[%c0_27, %c0_28], %33 {strides = array<i32>} : memref<8x32xf32, #tpu.memory_space<vmem>>, vector<8x32xf32>,
    %38 = arith.index_cast %c0_i32 : i32 to index
    %c0_29 = arith.constant 0 : index
    %c0_30 = arith.constant 0 : index
    %39 = vector.load %arg5[%38, %c0_29, %c0_30] : memref<8x8x32xf32, #tpu.memory_space<vmem>>, vector<1x8x32xf32>
    %40 = vector.shape_cast %39 : vector<1x8x32xf32> to vector<8x32xf32>
    %41 = vector.shape_cast %35 : vector<8x32xf32> to vector<1x8x32xf32>
    tpu.vector_store %arg5[%38, %c0_29, %c0_30], %41 {strides = array<i32>} : memref<8x8x32xf32, #tpu.memory_space<vmem>>, vector<1x8x32xf32>,
    %c1_i32 = arith.constant 1 : i32
    %c0_31 = arith.constant 0 : index
    %c0_32 = arith.constant 0 : index
    %42 = vector.load %arg7[%c0_31, %c0_32] : memref<8x32xf32, #tpu.memory_space<vmem>>, vector<8x32xf32>
    %c0_33 = arith.constant 0 : index
    %c0_34 = arith.constant 0 : index
    %43 = vector.load %arg8[%c0_33, %c0_34] : memref<8x32xf32, #tpu.memory_space<vmem>>, vector<8x32xf32>
    %44 = arith.index_cast %c1_i32 : i32 to index
    %c0_35 = arith.constant 0 : index
    %c0_36 = arith.constant 0 : index
    %45 = vector.load %arg6[%44, %c0_35, %c0_36] : memref<8x8x128xf32, #tpu.memory_space<vmem>>, vector<1x8x128xf32>
    %46 = vector.shape_cast %45 : vector<1x8x128xf32> to vector<8x128xf32>
    %cst_37 = arith.constant dense<0.000000e+00> : vector<8x128xf32>
    %47 = tpu.matmul %42, %13, %cst_37 {dimension_numbers = #tpu.dot_dimension_numbers<[1], [0], [0], [1], [0, 0, 1, 1], [], []>} : vector<8x32xf32>, vector<32x128xf32>, vector<8x128xf32> -> vector<8x128xf32>
    %48 = arith.addf %46, %47 : vector<8x128xf32>
    %49 = arith.negf %48 : vector<8x128xf32>
    %50 = math.exp %49 : vector<8x128xf32>
    %cst_38 = arith.constant 1.000000e+00 : f32
    %51 = vector.broadcast %cst_38 : f32 to vector<8x128xf32>
    %52 = arith.addf %51, %50 : vector<8x128xf32>
    %53 = arith.divf %51, %52 : vector<8x128xf32>
    %54 = vector.extract_strided_slice %53 {offsets = [0, 0], sizes = [8, 32], strides = [1, 1]} : vector<8x128xf32> to vector<8x32xf32>
    %55 = vector.extract_strided_slice %53 {offsets = [0, 32], sizes = [8, 32], strides = [1, 1]} : vector<8x128xf32> to vector<8x32xf32>
    %56 = vector.extract_strided_slice %53 {offsets = [0, 64], sizes = [8, 32], strides = [1, 1]} : vector<8x128xf32> to vector<8x32xf32>
    %57 = vector.extract_strided_slice %48 {offsets = [0, 96], sizes = [8, 32], strides = [1, 1]} : vector<8x128xf32> to vector<8x32xf32>
    %58 = math.tanh %57 : vector<8x32xf32>
    %59 = arith.mulf %55, %43 : vector<8x32xf32>
    %60 = arith.mulf %54, %58 : vector<8x32xf32>
    %61 = arith.addf %59, %60 : vector<8x32xf32>
    %62 = math.tanh %61 : vector<8x32xf32>
    %63 = arith.mulf %56, %62 : vector<8x32xf32>
    %c0_39 = arith.constant 0 : index
    %c0_40 = arith.constant 0 : index
    %64 = vector.load %arg7[%c0_39, %c0_40] : memref<8x32xf32, #tpu.memory_space<vmem>>, vector<8x32xf32>
    tpu.vector_store %arg7[%c0_39, %c0_40], %63 {strides = array<i32>} : memref<8x32xf32, #tpu.memory_space<vmem>>, vector<8x32xf32>,
    %c0_41 = arith.constant 0 : index
    %c0_42 = arith.constant 0 : index
    %65 = vector.load %arg8[%c0_41, %c0_42] : memref<8x32xf32, #tpu.memory_space<vmem>>, vector<8x32xf32>
    tpu.vector_store %arg8[%c0_41, %c0_42], %61 {strides = array<i32>} : memref<8x32xf32, #tpu.memory_space<vmem>>, vector<8x32xf32>,
    %66 = arith.index_cast %c1_i32 : i32 to index
    %c0_43 = arith.constant 0 : index
    %c0_44 = arith.constant 0 : index
    %67 = vector.load %arg5[%66, %c0_43, %c0_44] : memref<8x8x32xf32, #tpu.memory_space<vmem>>, vector<1x8x32xf32>
    %68 = vector.shape_cast %67 : vector<1x8x32xf32> to vector<8x32xf32>
    %69 = vector.shape_cast %63 : vector<8x32xf32> to vector<1x8x32xf32>
    tpu.vector_store %arg5[%66, %c0_43, %c0_44], %69 {strides = array<i32>} : memref<8x8x32xf32, #tpu.memory_space<vmem>>, vector<1x8x32xf32>,
    %c2_i32 = arith.constant 2 : i32
    %c0_45 = arith.constant 0 : index
    %c0_46 = arith.constant 0 : index
    %70 = vector.load %arg7[%c0_45, %c0_46] : memref<8x32xf32, #tpu.memory_space<vmem>>, vector<8x32xf32>
    %c0_47 = arith.constant 0 : index
    %c0_48 = arith.constant 0 : index
    %71 = vector.load %arg8[%c0_47, %c0_48] : memref<8x32xf32, #tpu.memory_space<vmem>>, vector<8x32xf32>
    %72 = arith.index_cast %c2_i32 : i32 to index
    %c0_49 = arith.constant 0 : index
    %c0_50 = arith.constant 0 : index
    %73 = vector.load %arg6[%72, %c0_49, %c0_50] : memref<8x8x128xf32, #tpu.memory_space<vmem>>, vector<1x8x128xf32>
    %74 = vector.shape_cast %73 : vector<1x8x128xf32> to vector<8x128xf32>
    %cst_51 = arith.constant dense<0.000000e+00> : vector<8x128xf32>
    %75 = tpu.matmul %70, %13, %cst_51 {dimension_numbers = #tpu.dot_dimension_numbers<[1], [0], [0], [1], [0, 0, 1, 1], [], []>} : vector<8x32xf32>, vector<32x128xf32>, vector<8x128xf32> -> vector<8x128xf32>
    %76 = arith.addf %74, %75 : vector<8x128xf32>
    %77 = arith.negf %76 : vector<8x128xf32>
    %78 = math.exp %77 : vector<8x128xf32>
    %cst_52 = arith.constant 1.000000e+00 : f32
    %79 = vector.broadcast %cst_52 : f32 to vector<8x128xf32>
    %80 = arith.addf %79, %78 : vector<8x128xf32>
    %81 = arith.divf %79, %80 : vector<8x128xf32>
    %82 = vector.extract_strided_slice %81 {offsets = [0, 0], sizes = [8, 32], strides = [1, 1]} : vector<8x128xf32> to vector<8x32xf32>
    %83 = vector.extract_strided_slice %81 {offsets = [0, 32], sizes = [8, 32], strides = [1, 1]} : vector<8x128xf32> to vector<8x32xf32>
    %84 = vector.extract_strided_slice %81 {offsets = [0, 64], sizes = [8, 32], strides = [1, 1]} : vector<8x128xf32> to vector<8x32xf32>
    %85 = vector.extract_strided_slice %76 {offsets = [0, 96], sizes = [8, 32], strides = [1, 1]} : vector<8x128xf32> to vector<8x32xf32>
    %86 = math.tanh %85 : vector<8x32xf32>
    %87 = arith.mulf %83, %71 : vector<8x32xf32>
    %88 = arith.mulf %82, %86 : vector<8x32xf32>
    %89 = arith.addf %87, %88 : vector<8x32xf32>
    %90 = math.tanh %89 : vector<8x32xf32>
    %91 = arith.mulf %84, %90 : vector<8x32xf32>
    %c0_53 = arith.constant 0 : index
    %c0_54 = arith.constant 0 : index
    %92 = vector.load %arg7[%c0_53, %c0_54] : memref<8x32xf32, #tpu.memory_space<vmem>>, vector<8x32xf32>
    tpu.vector_store %arg7[%c0_53, %c0_54], %91 {strides = array<i32>} : memref<8x32xf32, #tpu.memory_space<vmem>>, vector<8x32xf32>,
    %c0_55 = arith.constant 0 : index
    %c0_56 = arith.constant 0 : index
    %93 = vector.load %arg8[%c0_55, %c0_56] : memref<8x32xf32, #tpu.memory_space<vmem>>, vector<8x32xf32>
    tpu.vector_store %arg8[%c0_55, %c0_56], %89 {strides = array<i32>} : memref<8x32xf32, #tpu.memory_space<vmem>>, vector<8x32xf32>,
    %94 = arith.index_cast %c2_i32 : i32 to index
    %c0_57 = arith.constant 0 : index
    %c0_58 = arith.constant 0 : index
    %95 = vector.load %arg5[%94, %c0_57, %c0_58] : memref<8x8x32xf32, #tpu.memory_space<vmem>>, vector<1x8x32xf32>
    %96 = vector.shape_cast %95 : vector<1x8x32xf32> to vector<8x32xf32>
    %97 = vector.shape_cast %91 : vector<8x32xf32> to vector<1x8x32xf32>
    tpu.vector_store %arg5[%94, %c0_57, %c0_58], %97 {strides = array<i32>} : memref<8x8x32xf32, #tpu.memory_space<vmem>>, vector<1x8x32xf32>,
    %c3_i32 = arith.constant 3 : i32
    %c0_59 = arith.constant 0 : index
    %c0_60 = arith.constant 0 : index
    %98 = vector.load %arg7[%c0_59, %c0_60] : memref<8x32xf32, #tpu.memory_space<vmem>>, vector<8x32xf32>
    %c0_61 = arith.constant 0 : index
    %c0_62 = arith.constant 0 : index
    %99 = vector.load %arg8[%c0_61, %c0_62] : memref<8x32xf32, #tpu.memory_space<vmem>>, vector<8x32xf32>
    %100 = arith.index_cast %c3_i32 : i32 to index
    %c0_63 = arith.constant 0 : index
    %c0_64 = arith.constant 0 : index
    %101 = vector.load %arg6[%100, %c0_63, %c0_64] : memref<8x8x128xf32, #tpu.memory_space<vmem>>, vector<1x8x128xf32>
    %102 = vector.shape_cast %101 : vector<1x8x128xf32> to vector<8x128xf32>
    %cst_65 = arith.constant dense<0.000000e+00> : vector<8x128xf32>
    %103 = tpu.matmul %98, %13, %cst_65 {dimension_numbers = #tpu.dot_dimension_numbers<[1], [0], [0], [1], [0, 0, 1, 1], [], []>} : vector<8x32xf32>, vector<32x128xf32>, vector<8x128xf32> -> vector<8x128xf32>
    %104 = arith.addf %102, %103 : vector<8x128xf32>
    %105 = arith.negf %104 : vector<8x128xf32>
    %106 = math.exp %105 : vector<8x128xf32>
    %cst_66 = arith.constant 1.000000e+00 : f32
    %107 = vector.broadcast %cst_66 : f32 to vector<8x128xf32>
    %108 = arith.addf %107, %106 : vector<8x128xf32>
    %109 = arith.divf %107, %108 : vector<8x128xf32>
    %110 = vector.extract_strided_slice %109 {offsets = [0, 0], sizes = [8, 32], strides = [1, 1]} : vector<8x128xf32> to vector<8x32xf32>
    %111 = vector.extract_strided_slice %109 {offsets = [0, 32], sizes = [8, 32], strides = [1, 1]} : vector<8x128xf32> to vector<8x32xf32>
    %112 = vector.extract_strided_slice %109 {offsets = [0, 64], sizes = [8, 32], strides = [1, 1]} : vector<8x128xf32> to vector<8x32xf32>
    %113 = vector.extract_strided_slice %104 {offsets = [0, 96], sizes = [8, 32], strides = [1, 1]} : vector<8x128xf32> to vector<8x32xf32>
    %114 = math.tanh %113 : vector<8x32xf32>
    %115 = arith.mulf %111, %99 : vector<8x32xf32>
    %116 = arith.mulf %110, %114 : vector<8x32xf32>
    %117 = arith.addf %115, %116 : vector<8x32xf32>
    %118 = math.tanh %117 : vector<8x32xf32>
    %119 = arith.mulf %112, %118 : vector<8x32xf32>
    %c0_67 = arith.constant 0 : index
    %c0_68 = arith.constant 0 : index
    %120 = vector.load %arg7[%c0_67, %c0_68] : memref<8x32xf32, #tpu.memory_space<vmem>>, vector<8x32xf32>
    tpu.vector_store %arg7[%c0_67, %c0_68], %119 {strides = array<i32>} : memref<8x32xf32, #tpu.memory_space<vmem>>, vector<8x32xf32>,
    %c0_69 = arith.constant 0 : index
    %c0_70 = arith.constant 0 : index
    %121 = vector.load %arg8[%c0_69, %c0_70] : memref<8x32xf32, #tpu.memory_space<vmem>>, vector<8x32xf32>
    tpu.vector_store %arg8[%c0_69, %c0_70], %117 {strides = array<i32>} : memref<8x32xf32, #tpu.memory_space<vmem>>, vector<8x32xf32>,
    %122 = arith.index_cast %c3_i32 : i32 to index
    %c0_71 = arith.constant 0 : index
    %c0_72 = arith.constant 0 : index
    %123 = vector.load %arg5[%122, %c0_71, %c0_72] : memref<8x8x32xf32, #tpu.memory_space<vmem>>, vector<1x8x32xf32>
    %124 = vector.shape_cast %123 : vector<1x8x32xf32> to vector<8x32xf32>
    %125 = vector.shape_cast %119 : vector<8x32xf32> to vector<1x8x32xf32>
    tpu.vector_store %arg5[%122, %c0_71, %c0_72], %125 {strides = array<i32>} : memref<8x8x32xf32, #tpu.memory_space<vmem>>, vector<1x8x32xf32>,
    %c4_i32 = arith.constant 4 : i32
    %c0_73 = arith.constant 0 : index
    %c0_74 = arith.constant 0 : index
    %126 = vector.load %arg7[%c0_73, %c0_74] : memref<8x32xf32, #tpu.memory_space<vmem>>, vector<8x32xf32>
    %c0_75 = arith.constant 0 : index
    %c0_76 = arith.constant 0 : index
    %127 = vector.load %arg8[%c0_75, %c0_76] : memref<8x32xf32, #tpu.memory_space<vmem>>, vector<8x32xf32>
    %128 = arith.index_cast %c4_i32 : i32 to index
    %c0_77 = arith.constant 0 : index
    %c0_78 = arith.constant 0 : index
    %129 = vector.load %arg6[%128, %c0_77, %c0_78] : memref<8x8x128xf32, #tpu.memory_space<vmem>>, vector<1x8x128xf32>
    %130 = vector.shape_cast %129 : vector<1x8x128xf32> to vector<8x128xf32>
    %cst_79 = arith.constant dense<0.000000e+00> : vector<8x128xf32>
    %131 = tpu.matmul %126, %13, %cst_79 {dimension_numbers = #tpu.dot_dimension_numbers<[1], [0], [0], [1], [0, 0, 1, 1], [], []>} : vector<8x32xf32>, vector<32x128xf32>, vector<8x128xf32> -> vector<8x128xf32>
    %132 = arith.addf %130, %131 : vector<8x128xf32>
    %133 = arith.negf %132 : vector<8x128xf32>
    %134 = math.exp %133 : vector<8x128xf32>
    %cst_80 = arith.constant 1.000000e+00 : f32
    %135 = vector.broadcast %cst_80 : f32 to vector<8x128xf32>
    %136 = arith.addf %135, %134 : vector<8x128xf32>
    %137 = arith.divf %135, %136 : vector<8x128xf32>
    %138 = vector.extract_strided_slice %137 {offsets = [0, 0], sizes = [8, 32], strides = [1, 1]} : vector<8x128xf32> to vector<8x32xf32>
    %139 = vector.extract_strided_slice %137 {offsets = [0, 32], sizes = [8, 32], strides = [1, 1]} : vector<8x128xf32> to vector<8x32xf32>
    %140 = vector.extract_strided_slice %137 {offsets = [0, 64], sizes = [8, 32], strides = [1, 1]} : vector<8x128xf32> to vector<8x32xf32>
    %141 = vector.extract_strided_slice %132 {offsets = [0, 96], sizes = [8, 32], strides = [1, 1]} : vector<8x128xf32> to vector<8x32xf32>
    %142 = math.tanh %141 : vector<8x32xf32>
    %143 = arith.mulf %139, %127 : vector<8x32xf32>
    %144 = arith.mulf %138, %142 : vector<8x32xf32>
    %145 = arith.addf %143, %144 : vector<8x32xf32>
    %146 = math.tanh %145 : vector<8x32xf32>
    %147 = arith.mulf %140, %146 : vector<8x32xf32>
    %c0_81 = arith.constant 0 : index
    %c0_82 = arith.constant 0 : index
    %148 = vector.load %arg7[%c0_81, %c0_82] : memref<8x32xf32, #tpu.memory_space<vmem>>, vector<8x32xf32>
    tpu.vector_store %arg7[%c0_81, %c0_82], %147 {strides = array<i32>} : memref<8x32xf32, #tpu.memory_space<vmem>>, vector<8x32xf32>,
    %c0_83 = arith.constant 0 : index
    %c0_84 = arith.constant 0 : index
    %149 = vector.load %arg8[%c0_83, %c0_84] : memref<8x32xf32, #tpu.memory_space<vmem>>, vector<8x32xf32>
    tpu.vector_store %arg8[%c0_83, %c0_84], %145 {strides = array<i32>} : memref<8x32xf32, #tpu.memory_space<vmem>>, vector<8x32xf32>,
    %150 = arith.index_cast %c4_i32 : i32 to index
    %c0_85 = arith.constant 0 : index
    %c0_86 = arith.constant 0 : index
    %151 = vector.load %arg5[%150, %c0_85, %c0_86] : memref<8x8x32xf32, #tpu.memory_space<vmem>>, vector<1x8x32xf32>
    %152 = vector.shape_cast %151 : vector<1x8x32xf32> to vector<8x32xf32>
    %153 = vector.shape_cast %147 : vector<8x32xf32> to vector<1x8x32xf32>
    tpu.vector_store %arg5[%150, %c0_85, %c0_86], %153 {strides = array<i32>} : memref<8x8x32xf32, #tpu.memory_space<vmem>>, vector<1x8x32xf32>,
    %c5_i32 = arith.constant 5 : i32
    %c0_87 = arith.constant 0 : index
    %c0_88 = arith.constant 0 : index
    %154 = vector.load %arg7[%c0_87, %c0_88] : memref<8x32xf32, #tpu.memory_space<vmem>>, vector<8x32xf32>
    %c0_89 = arith.constant 0 : index
    %c0_90 = arith.constant 0 : index
    %155 = vector.load %arg8[%c0_89, %c0_90] : memref<8x32xf32, #tpu.memory_space<vmem>>, vector<8x32xf32>
    %156 = arith.index_cast %c5_i32 : i32 to index
    %c0_91 = arith.constant 0 : index
    %c0_92 = arith.constant 0 : index
    %157 = vector.load %arg6[%156, %c0_91, %c0_92] : memref<8x8x128xf32, #tpu.memory_space<vmem>>, vector<1x8x128xf32>
    %158 = vector.shape_cast %157 : vector<1x8x128xf32> to vector<8x128xf32>
    %cst_93 = arith.constant dense<0.000000e+00> : vector<8x128xf32>
    %159 = tpu.matmul %154, %13, %cst_93 {dimension_numbers = #tpu.dot_dimension_numbers<[1], [0], [0], [1], [0, 0, 1, 1], [], []>} : vector<8x32xf32>, vector<32x128xf32>, vector<8x128xf32> -> vector<8x128xf32>
    %160 = arith.addf %158, %159 : vector<8x128xf32>
    %161 = arith.negf %160 : vector<8x128xf32>
    %162 = math.exp %161 : vector<8x128xf32>
    %cst_94 = arith.constant 1.000000e+00 : f32
    %163 = vector.broadcast %cst_94 : f32 to vector<8x128xf32>
    %164 = arith.addf %163, %162 : vector<8x128xf32>
    %165 = arith.divf %163, %164 : vector<8x128xf32>
    %166 = vector.extract_strided_slice %165 {offsets = [0, 0], sizes = [8, 32], strides = [1, 1]} : vector<8x128xf32> to vector<8x32xf32>
    %167 = vector.extract_strided_slice %165 {offsets = [0, 32], sizes = [8, 32], strides = [1, 1]} : vector<8x128xf32> to vector<8x32xf32>
    %168 = vector.extract_strided_slice %165 {offsets = [0, 64], sizes = [8, 32], strides = [1, 1]} : vector<8x128xf32> to vector<8x32xf32>
    %169 = vector.extract_strided_slice %160 {offsets = [0, 96], sizes = [8, 32], strides = [1, 1]} : vector<8x128xf32> to vector<8x32xf32>
    %170 = math.tanh %169 : vector<8x32xf32>
    %171 = arith.mulf %167, %155 : vector<8x32xf32>
    %172 = arith.mulf %166, %170 : vector<8x32xf32>
    %173 = arith.addf %171, %172 : vector<8x32xf32>
    %174 = math.tanh %173 : vector<8x32xf32>
    %175 = arith.mulf %168, %174 : vector<8x32xf32>
    %c0_95 = arith.constant 0 : index
    %c0_96 = arith.constant 0 : index
    %176 = vector.load %arg7[%c0_95, %c0_96] : memref<8x32xf32, #tpu.memory_space<vmem>>, vector<8x32xf32>
    tpu.vector_store %arg7[%c0_95, %c0_96], %175 {strides = array<i32>} : memref<8x32xf32, #tpu.memory_space<vmem>>, vector<8x32xf32>,
    %c0_97 = arith.constant 0 : index
    %c0_98 = arith.constant 0 : index
    %177 = vector.load %arg8[%c0_97, %c0_98] : memref<8x32xf32, #tpu.memory_space<vmem>>, vector<8x32xf32>
    tpu.vector_store %arg8[%c0_97, %c0_98], %173 {strides = array<i32>} : memref<8x32xf32, #tpu.memory_space<vmem>>, vector<8x32xf32>,
    %178 = arith.index_cast %c5_i32 : i32 to index
    %c0_99 = arith.constant 0 : index
    %c0_100 = arith.constant 0 : index
    %179 = vector.load %arg5[%178, %c0_99, %c0_100] : memref<8x8x32xf32, #tpu.memory_space<vmem>>, vector<1x8x32xf32>
    %180 = vector.shape_cast %179 : vector<1x8x32xf32> to vector<8x32xf32>
    %181 = vector.shape_cast %175 : vector<8x32xf32> to vector<1x8x32xf32>
    tpu.vector_store %arg5[%178, %c0_99, %c0_100], %181 {strides = array<i32>} : memref<8x8x32xf32, #tpu.memory_space<vmem>>, vector<1x8x32xf32>,
    %c6_i32 = arith.constant 6 : i32
    %c0_101 = arith.constant 0 : index
    %c0_102 = arith.constant 0 : index
    %182 = vector.load %arg7[%c0_101, %c0_102] : memref<8x32xf32, #tpu.memory_space<vmem>>, vector<8x32xf32>
    %c0_103 = arith.constant 0 : index
    %c0_104 = arith.constant 0 : index
    %183 = vector.load %arg8[%c0_103, %c0_104] : memref<8x32xf32, #tpu.memory_space<vmem>>, vector<8x32xf32>
    %184 = arith.index_cast %c6_i32 : i32 to index
    %c0_105 = arith.constant 0 : index
    %c0_106 = arith.constant 0 : index
    %185 = vector.load %arg6[%184, %c0_105, %c0_106] : memref<8x8x128xf32, #tpu.memory_space<vmem>>, vector<1x8x128xf32>
    %186 = vector.shape_cast %185 : vector<1x8x128xf32> to vector<8x128xf32>
    %cst_107 = arith.constant dense<0.000000e+00> : vector<8x128xf32>
    %187 = tpu.matmul %182, %13, %cst_107 {dimension_numbers = #tpu.dot_dimension_numbers<[1], [0], [0], [1], [0, 0, 1, 1], [], []>} : vector<8x32xf32>, vector<32x128xf32>, vector<8x128xf32> -> vector<8x128xf32>
    %188 = arith.addf %186, %187 : vector<8x128xf32>
    %189 = arith.negf %188 : vector<8x128xf32>
    %190 = math.exp %189 : vector<8x128xf32>
    %cst_108 = arith.constant 1.000000e+00 : f32
    %191 = vector.broadcast %cst_108 : f32 to vector<8x128xf32>
    %192 = arith.addf %191, %190 : vector<8x128xf32>
    %193 = arith.divf %191, %192 : vector<8x128xf32>
    %194 = vector.extract_strided_slice %193 {offsets = [0, 0], sizes = [8, 32], strides = [1, 1]} : vector<8x128xf32> to vector<8x32xf32>
    %195 = vector.extract_strided_slice %193 {offsets = [0, 32], sizes = [8, 32], strides = [1, 1]} : vector<8x128xf32> to vector<8x32xf32>
    %196 = vector.extract_strided_slice %193 {offsets = [0, 64], sizes = [8, 32], strides = [1, 1]} : vector<8x128xf32> to vector<8x32xf32>
    %197 = vector.extract_strided_slice %188 {offsets = [0, 96], sizes = [8, 32], strides = [1, 1]} : vector<8x128xf32> to vector<8x32xf32>
    %198 = math.tanh %197 : vector<8x32xf32>
    %199 = arith.mulf %195, %183 : vector<8x32xf32>
    %200 = arith.mulf %194, %198 : vector<8x32xf32>
    %201 = arith.addf %199, %200 : vector<8x32xf32>
    %202 = math.tanh %201 : vector<8x32xf32>
    %203 = arith.mulf %196, %202 : vector<8x32xf32>
    %c0_109 = arith.constant 0 : index
    %c0_110 = arith.constant 0 : index
    %204 = vector.load %arg7[%c0_109, %c0_110] : memref<8x32xf32, #tpu.memory_space<vmem>>, vector<8x32xf32>
    tpu.vector_store %arg7[%c0_109, %c0_110], %203 {strides = array<i32>} : memref<8x32xf32, #tpu.memory_space<vmem>>, vector<8x32xf32>,
    %c0_111 = arith.constant 0 : index
    %c0_112 = arith.constant 0 : index
    %205 = vector.load %arg8[%c0_111, %c0_112] : memref<8x32xf32, #tpu.memory_space<vmem>>, vector<8x32xf32>
    tpu.vector_store %arg8[%c0_111, %c0_112], %201 {strides = array<i32>} : memref<8x32xf32, #tpu.memory_space<vmem>>, vector<8x32xf32>,
    %206 = arith.index_cast %c6_i32 : i32 to index
    %c0_113 = arith.constant 0 : index
    %c0_114 = arith.constant 0 : index
    %207 = vector.load %arg5[%206, %c0_113, %c0_114] : memref<8x8x32xf32, #tpu.memory_space<vmem>>, vector<1x8x32xf32>
    %208 = vector.shape_cast %207 : vector<1x8x32xf32> to vector<8x32xf32>
    %209 = vector.shape_cast %203 : vector<8x32xf32> to vector<1x8x32xf32>
    tpu.vector_store %arg5[%206, %c0_113, %c0_114], %209 {strides = array<i32>} : memref<8x8x32xf32, #tpu.memory_space<vmem>>, vector<1x8x32xf32>,
    %c7_i32 = arith.constant 7 : i32
    %c0_115 = arith.constant 0 : index
    %c0_116 = arith.constant 0 : index
    %210 = vector.load %arg7[%c0_115, %c0_116] : memref<8x32xf32, #tpu.memory_space<vmem>>, vector<8x32xf32>
    %c0_117 = arith.constant 0 : index
    %c0_118 = arith.constant 0 : index
    %211 = vector.load %arg8[%c0_117, %c0_118] : memref<8x32xf32, #tpu.memory_space<vmem>>, vector<8x32xf32>
    %212 = arith.index_cast %c7_i32 : i32 to index
    %c0_119 = arith.constant 0 : index
    %c0_120 = arith.constant 0 : index
    %213 = vector.load %arg6[%212, %c0_119, %c0_120] : memref<8x8x128xf32, #tpu.memory_space<vmem>>, vector<1x8x128xf32>
    %214 = vector.shape_cast %213 : vector<1x8x128xf32> to vector<8x128xf32>
    %cst_121 = arith.constant dense<0.000000e+00> : vector<8x128xf32>
    %215 = tpu.matmul %210, %13, %cst_121 {dimension_numbers = #tpu.dot_dimension_numbers<[1], [0], [0], [1], [0, 0, 1, 1], [], []>} : vector<8x32xf32>, vector<32x128xf32>, vector<8x128xf32> -> vector<8x128xf32>
    %216 = arith.addf %214, %215 : vector<8x128xf32>
    %217 = arith.negf %216 : vector<8x128xf32>
    %218 = math.exp %217 : vector<8x128xf32>
    %cst_122 = arith.constant 1.000000e+00 : f32
    %219 = vector.broadcast %cst_122 : f32 to vector<8x128xf32>
    %220 = arith.addf %219, %218 : vector<8x128xf32>
    %221 = arith.divf %219, %220 : vector<8x128xf32>
    %222 = vector.extract_strided_slice %221 {offsets = [0, 0], sizes = [8, 32], strides = [1, 1]} : vector<8x128xf32> to vector<8x32xf32>
    %223 = vector.extract_strided_slice %221 {offsets = [0, 32], sizes = [8, 32], strides = [1, 1]} : vector<8x128xf32> to vector<8x32xf32>
    %224 = vector.extract_strided_slice %221 {offsets = [0, 64], sizes = [8, 32], strides = [1, 1]} : vector<8x128xf32> to vector<8x32xf32>
    %225 = vector.extract_strided_slice %216 {offsets = [0, 96], sizes = [8, 32], strides = [1, 1]} : vector<8x128xf32> to vector<8x32xf32>
    %226 = math.tanh %225 : vector<8x32xf32>
    %227 = arith.mulf %223, %211 : vector<8x32xf32>
    %228 = arith.mulf %222, %226 : vector<8x32xf32>
    %229 = arith.addf %227, %228 : vector<8x32xf32>
    %230 = math.tanh %229 : vector<8x32xf32>
    %231 = arith.mulf %224, %230 : vector<8x32xf32>
    %c0_123 = arith.constant 0 : index
    %c0_124 = arith.constant 0 : index
    %232 = vector.load %arg7[%c0_123, %c0_124] : memref<8x32xf32, #tpu.memory_space<vmem>>, vector<8x32xf32>
    tpu.vector_store %arg7[%c0_123, %c0_124], %231 {strides = array<i32>} : memref<8x32xf32, #tpu.memory_space<vmem>>, vector<8x32xf32>,
    %c0_125 = arith.constant 0 : index
    %c0_126 = arith.constant 0 : index
    %233 = vector.load %arg8[%c0_125, %c0_126] : memref<8x32xf32, #tpu.memory_space<vmem>>, vector<8x32xf32>
    tpu.vector_store %arg8[%c0_125, %c0_126], %229 {strides = array<i32>} : memref<8x32xf32, #tpu.memory_space<vmem>>, vector<8x32xf32>,
    %234 = arith.index_cast %c7_i32 : i32 to index
    %c0_127 = arith.constant 0 : index
    %c0_128 = arith.constant 0 : index
    %235 = vector.load %arg5[%234, %c0_127, %c0_128] : memref<8x8x32xf32, #tpu.memory_space<vmem>>, vector<1x8x32xf32>
    %236 = vector.shape_cast %235 : vector<1x8x32xf32> to vector<8x32xf32>
    %237 = vector.shape_cast %231 : vector<8x32xf32> to vector<1x8x32xf32>
    tpu.vector_store %arg5[%234, %c0_127, %c0_128], %237 {strides = array<i32>} : memref<8x8x32xf32, #tpu.memory_space<vmem>>, vector<1x8x32xf32>,
    %c8_i32 = arith.constant 8 : i32
    return
  }
  func.func @transform_0(%arg0: i32) -> (i32, i32, i32) {
    %c0_i32 = arith.constant 0 : i32
    %c0_i32_0 = arith.constant 0 : i32
    %c0_i32_1 = arith.constant 0 : i32
    return %c0_i32, %arg0, %c0_i32_0 : i32, i32, i32
  }
  func.func @transform_1(%arg0: i32) -> (i32, i32) {
    %c0_i32 = arith.constant 0 : i32
    %c0_i32_0 = arith.constant 0 : i32
    %c0_i32_1 = arith.constant 0 : i32
    return %c0_i32, %c0_i32_0 : i32, i32
  }
  func.func @transform_2(%arg0: i32) -> (i32, i32) {
    %c0_i32 = arith.constant 0 : i32
    %c0_i32_0 = arith.constant 0 : i32
    %c0_i32_1 = arith.constant 0 : i32
    return %c0_i32, %c0_i32_0 : i32, i32
  }
  func.func @transform_3(%arg0: i32) -> (i32, i32) {
    %c0_i32 = arith.constant 0 : i32
    %c0_i32_0 = arith.constant 0 : i32
    %c0_i32_1 = arith.constant 0 : i32
    return %c0_i32, %c0_i32_0 : i32, i32
  }
  func.func @transform_4(%arg0: i32) -> (i32, i32, i32) {
    %c0_i32 = arith.constant 0 : i32
    %c0_i32_0 = arith.constant 0 : i32
    %c0_i32_1 = arith.constant 0 : i32
    return %c0_i32, %arg0, %c0_i32_0 : i32, i32, i32
  }
}

module attributes {stable_mosaic.version = 11 : i64} {
  func.func @_lstm_head_kernel(%arg0: i32, %arg1: memref<8x8x32xf32, #tpu.memory_space<vmem>>, %arg2: memref<32x128xf32, #tpu.memory_space<vmem>>, %arg3: memref<1x128xf32, #tpu.memory_space<vmem>>, %arg4: memref<32x128xf32, #tpu.memory_space<vmem>>, %arg5: memref<32x128xf32, #tpu.memory_space<vmem>>, %arg6: memref<1x128xf32, #tpu.memory_space<vmem>>, %arg7: memref<8x128xf32, #tpu.memory_space<vmem>>, %arg8: memref<8x8x128xf32, #tpu.memory_space<vmem>>, %arg9: memref<8x32xf32, #tpu.memory_space<vmem>>, %arg10: memref<8x32xf32, #tpu.memory_space<vmem>>) attributes {dimension_semantics = [#tpu.dimension_semantics<parallel>], iteration_bounds = array<i64: 1>, scalar_prefetch = 0 : i64, scratch_operands = 3 : i64, tpu.core_type = #tpu.core_type<tc>, window_params = [{transform_indices = @transform_0, window_bounds = array<i64: 8, 8, 32>}, {pipeline_mode = #tpu.pipeline_mode<synchronous>, transform_indices = @transform_1, window_bounds = array<i64: 32, 128>}, {pipeline_mode = #tpu.pipeline_mode<synchronous>, transform_indices = @transform_2, window_bounds = array<i64: 1, 128>}, {pipeline_mode = #tpu.pipeline_mode<synchronous>, transform_indices = @transform_3, window_bounds = array<i64: 32, 128>}, {pipeline_mode = #tpu.pipeline_mode<synchronous>, transform_indices = @transform_4, window_bounds = array<i64: 32, 128>}, {pipeline_mode = #tpu.pipeline_mode<synchronous>, transform_indices = @transform_5, window_bounds = array<i64: 1, 128>}, {transform_indices = @transform_6, window_bounds = array<i64: 8, 128>}]} {
    %c0 = arith.constant 0 : index
    %c0_0 = arith.constant 0 : index
    %c0_1 = arith.constant 0 : index
    %0 = vector.load %arg1[%c0, %c0_0, %c0_1] : memref<8x8x32xf32, #tpu.memory_space<vmem>>, vector<8x8x32xf32>
    %1 = vector.shape_cast %0 : vector<8x8x32xf32> to vector<64x32xf32>
    %c0_2 = arith.constant 0 : index
    %c0_3 = arith.constant 0 : index
    %2 = vector.load %arg2[%c0_2, %c0_3] : memref<32x128xf32, #tpu.memory_space<vmem>>, vector<32x128xf32>
    %cst = arith.constant dense<0.000000e+00> : vector<64x128xf32>
    %3 = tpu.matmul %1, %2, %cst {dimension_numbers = #tpu.dot_dimension_numbers<[1], [0], [0], [1], [0, 0, 1, 1], [], []>} : vector<64x32xf32>, vector<32x128xf32>, vector<64x128xf32> -> vector<64x128xf32>
    %c0_4 = arith.constant 0 : index
    %c0_5 = arith.constant 0 : index
    %4 = vector.load %arg3[%c0_4, %c0_5] : memref<1x128xf32, #tpu.memory_space<vmem>>, vector<1x128xf32>
    %5 = vector.broadcast %4 : vector<1x128xf32> to vector<64x128xf32>
    %6 = arith.addf %3, %5 : vector<64x128xf32>
    %7 = vector.shape_cast %6 : vector<64x128xf32> to vector<8x8x128xf32>
    %c0_6 = arith.constant 0 : index
    %c0_7 = arith.constant 0 : index
    %c0_8 = arith.constant 0 : index
    %8 = vector.load %arg8[%c0_6, %c0_7, %c0_8] : memref<8x8x128xf32, #tpu.memory_space<vmem>>, vector<8x8x128xf32>
    tpu.vector_store %arg8[%c0_6, %c0_7, %c0_8], %7 {strides = array<i32>} : memref<8x8x128xf32, #tpu.memory_space<vmem>>, vector<8x8x128xf32>,
    %cst_9 = arith.constant 0.000000e+00 : f32
    %9 = vector.broadcast %cst_9 : f32 to vector<8x32xf32>
    %c0_10 = arith.constant 0 : index
    %c0_11 = arith.constant 0 : index
    %10 = vector.load %arg9[%c0_10, %c0_11] : memref<8x32xf32, #tpu.memory_space<vmem>>, vector<8x32xf32>
    tpu.vector_store %arg9[%c0_10, %c0_11], %9 {strides = array<i32>} : memref<8x32xf32, #tpu.memory_space<vmem>>, vector<8x32xf32>,
    %cst_12 = arith.constant 0.000000e+00 : f32
    %11 = vector.broadcast %cst_12 : f32 to vector<8x32xf32>
    %c0_13 = arith.constant 0 : index
    %c0_14 = arith.constant 0 : index
    %12 = vector.load %arg10[%c0_13, %c0_14] : memref<8x32xf32, #tpu.memory_space<vmem>>, vector<8x32xf32>
    tpu.vector_store %arg10[%c0_13, %c0_14], %11 {strides = array<i32>} : memref<8x32xf32, #tpu.memory_space<vmem>>, vector<8x32xf32>,
    %c0_15 = arith.constant 0 : index
    %c0_16 = arith.constant 0 : index
    %13 = vector.load %arg4[%c0_15, %c0_16] : memref<32x128xf32, #tpu.memory_space<vmem>>, vector<32x128xf32>
    %c0_i32 = arith.constant 0 : i32
    %c0_17 = arith.constant 0 : index
    %c0_18 = arith.constant 0 : index
    %14 = vector.load %arg9[%c0_17, %c0_18] : memref<8x32xf32, #tpu.memory_space<vmem>>, vector<8x32xf32>
    %c0_19 = arith.constant 0 : index
    %c0_20 = arith.constant 0 : index
    %15 = vector.load %arg10[%c0_19, %c0_20] : memref<8x32xf32, #tpu.memory_space<vmem>>, vector<8x32xf32>
    %16 = arith.index_cast %c0_i32 : i32 to index
    %c0_21 = arith.constant 0 : index
    %c0_22 = arith.constant 0 : index
    %17 = vector.load %arg8[%16, %c0_21, %c0_22] : memref<8x8x128xf32, #tpu.memory_space<vmem>>, vector<1x8x128xf32>
    %18 = vector.shape_cast %17 : vector<1x8x128xf32> to vector<8x128xf32>
    %cst_23 = arith.constant dense<0.000000e+00> : vector<8x128xf32>
    %19 = tpu.matmul %14, %13, %cst_23 {dimension_numbers = #tpu.dot_dimension_numbers<[1], [0], [0], [1], [0, 0, 1, 1], [], []>} : vector<8x32xf32>, vector<32x128xf32>, vector<8x128xf32> -> vector<8x128xf32>
    %20 = arith.addf %18, %19 : vector<8x128xf32>
    %21 = arith.negf %20 : vector<8x128xf32>
    %22 = math.exp %21 : vector<8x128xf32>
    %cst_24 = arith.constant 1.000000e+00 : f32
    %23 = vector.broadcast %cst_24 : f32 to vector<8x128xf32>
    %24 = arith.addf %23, %22 : vector<8x128xf32>
    %25 = arith.divf %23, %24 : vector<8x128xf32>
    %26 = vector.extract_strided_slice %25 {offsets = [0, 0], sizes = [8, 32], strides = [1, 1]} : vector<8x128xf32> to vector<8x32xf32>
    %27 = vector.extract_strided_slice %25 {offsets = [0, 32], sizes = [8, 32], strides = [1, 1]} : vector<8x128xf32> to vector<8x32xf32>
    %28 = vector.extract_strided_slice %25 {offsets = [0, 64], sizes = [8, 32], strides = [1, 1]} : vector<8x128xf32> to vector<8x32xf32>
    %29 = vector.extract_strided_slice %20 {offsets = [0, 96], sizes = [8, 32], strides = [1, 1]} : vector<8x128xf32> to vector<8x32xf32>
    %30 = math.tanh %29 : vector<8x32xf32>
    %31 = arith.mulf %27, %15 : vector<8x32xf32>
    %32 = arith.mulf %26, %30 : vector<8x32xf32>
    %33 = arith.addf %31, %32 : vector<8x32xf32>
    %34 = math.tanh %33 : vector<8x32xf32>
    %35 = arith.mulf %28, %34 : vector<8x32xf32>
    %c0_25 = arith.constant 0 : index
    %c0_26 = arith.constant 0 : index
    %36 = vector.load %arg9[%c0_25, %c0_26] : memref<8x32xf32, #tpu.memory_space<vmem>>, vector<8x32xf32>
    tpu.vector_store %arg9[%c0_25, %c0_26], %35 {strides = array<i32>} : memref<8x32xf32, #tpu.memory_space<vmem>>, vector<8x32xf32>,
    %c0_27 = arith.constant 0 : index
    %c0_28 = arith.constant 0 : index
    %37 = vector.load %arg10[%c0_27, %c0_28] : memref<8x32xf32, #tpu.memory_space<vmem>>, vector<8x32xf32>
    tpu.vector_store %arg10[%c0_27, %c0_28], %33 {strides = array<i32>} : memref<8x32xf32, #tpu.memory_space<vmem>>, vector<8x32xf32>,
    %c1_i32 = arith.constant 1 : i32
    %c0_29 = arith.constant 0 : index
    %c0_30 = arith.constant 0 : index
    %38 = vector.load %arg9[%c0_29, %c0_30] : memref<8x32xf32, #tpu.memory_space<vmem>>, vector<8x32xf32>
    %c0_31 = arith.constant 0 : index
    %c0_32 = arith.constant 0 : index
    %39 = vector.load %arg10[%c0_31, %c0_32] : memref<8x32xf32, #tpu.memory_space<vmem>>, vector<8x32xf32>
    %40 = arith.index_cast %c1_i32 : i32 to index
    %c0_33 = arith.constant 0 : index
    %c0_34 = arith.constant 0 : index
    %41 = vector.load %arg8[%40, %c0_33, %c0_34] : memref<8x8x128xf32, #tpu.memory_space<vmem>>, vector<1x8x128xf32>
    %42 = vector.shape_cast %41 : vector<1x8x128xf32> to vector<8x128xf32>
    %cst_35 = arith.constant dense<0.000000e+00> : vector<8x128xf32>
    %43 = tpu.matmul %38, %13, %cst_35 {dimension_numbers = #tpu.dot_dimension_numbers<[1], [0], [0], [1], [0, 0, 1, 1], [], []>} : vector<8x32xf32>, vector<32x128xf32>, vector<8x128xf32> -> vector<8x128xf32>
    %44 = arith.addf %42, %43 : vector<8x128xf32>
    %45 = arith.negf %44 : vector<8x128xf32>
    %46 = math.exp %45 : vector<8x128xf32>
    %cst_36 = arith.constant 1.000000e+00 : f32
    %47 = vector.broadcast %cst_36 : f32 to vector<8x128xf32>
    %48 = arith.addf %47, %46 : vector<8x128xf32>
    %49 = arith.divf %47, %48 : vector<8x128xf32>
    %50 = vector.extract_strided_slice %49 {offsets = [0, 0], sizes = [8, 32], strides = [1, 1]} : vector<8x128xf32> to vector<8x32xf32>
    %51 = vector.extract_strided_slice %49 {offsets = [0, 32], sizes = [8, 32], strides = [1, 1]} : vector<8x128xf32> to vector<8x32xf32>
    %52 = vector.extract_strided_slice %49 {offsets = [0, 64], sizes = [8, 32], strides = [1, 1]} : vector<8x128xf32> to vector<8x32xf32>
    %53 = vector.extract_strided_slice %44 {offsets = [0, 96], sizes = [8, 32], strides = [1, 1]} : vector<8x128xf32> to vector<8x32xf32>
    %54 = math.tanh %53 : vector<8x32xf32>
    %55 = arith.mulf %51, %39 : vector<8x32xf32>
    %56 = arith.mulf %50, %54 : vector<8x32xf32>
    %57 = arith.addf %55, %56 : vector<8x32xf32>
    %58 = math.tanh %57 : vector<8x32xf32>
    %59 = arith.mulf %52, %58 : vector<8x32xf32>
    %c0_37 = arith.constant 0 : index
    %c0_38 = arith.constant 0 : index
    %60 = vector.load %arg9[%c0_37, %c0_38] : memref<8x32xf32, #tpu.memory_space<vmem>>, vector<8x32xf32>
    tpu.vector_store %arg9[%c0_37, %c0_38], %59 {strides = array<i32>} : memref<8x32xf32, #tpu.memory_space<vmem>>, vector<8x32xf32>,
    %c0_39 = arith.constant 0 : index
    %c0_40 = arith.constant 0 : index
    %61 = vector.load %arg10[%c0_39, %c0_40] : memref<8x32xf32, #tpu.memory_space<vmem>>, vector<8x32xf32>
    tpu.vector_store %arg10[%c0_39, %c0_40], %57 {strides = array<i32>} : memref<8x32xf32, #tpu.memory_space<vmem>>, vector<8x32xf32>,
    %c2_i32 = arith.constant 2 : i32
    %c0_41 = arith.constant 0 : index
    %c0_42 = arith.constant 0 : index
    %62 = vector.load %arg9[%c0_41, %c0_42] : memref<8x32xf32, #tpu.memory_space<vmem>>, vector<8x32xf32>
    %c0_43 = arith.constant 0 : index
    %c0_44 = arith.constant 0 : index
    %63 = vector.load %arg10[%c0_43, %c0_44] : memref<8x32xf32, #tpu.memory_space<vmem>>, vector<8x32xf32>
    %64 = arith.index_cast %c2_i32 : i32 to index
    %c0_45 = arith.constant 0 : index
    %c0_46 = arith.constant 0 : index
    %65 = vector.load %arg8[%64, %c0_45, %c0_46] : memref<8x8x128xf32, #tpu.memory_space<vmem>>, vector<1x8x128xf32>
    %66 = vector.shape_cast %65 : vector<1x8x128xf32> to vector<8x128xf32>
    %cst_47 = arith.constant dense<0.000000e+00> : vector<8x128xf32>
    %67 = tpu.matmul %62, %13, %cst_47 {dimension_numbers = #tpu.dot_dimension_numbers<[1], [0], [0], [1], [0, 0, 1, 1], [], []>} : vector<8x32xf32>, vector<32x128xf32>, vector<8x128xf32> -> vector<8x128xf32>
    %68 = arith.addf %66, %67 : vector<8x128xf32>
    %69 = arith.negf %68 : vector<8x128xf32>
    %70 = math.exp %69 : vector<8x128xf32>
    %cst_48 = arith.constant 1.000000e+00 : f32
    %71 = vector.broadcast %cst_48 : f32 to vector<8x128xf32>
    %72 = arith.addf %71, %70 : vector<8x128xf32>
    %73 = arith.divf %71, %72 : vector<8x128xf32>
    %74 = vector.extract_strided_slice %73 {offsets = [0, 0], sizes = [8, 32], strides = [1, 1]} : vector<8x128xf32> to vector<8x32xf32>
    %75 = vector.extract_strided_slice %73 {offsets = [0, 32], sizes = [8, 32], strides = [1, 1]} : vector<8x128xf32> to vector<8x32xf32>
    %76 = vector.extract_strided_slice %73 {offsets = [0, 64], sizes = [8, 32], strides = [1, 1]} : vector<8x128xf32> to vector<8x32xf32>
    %77 = vector.extract_strided_slice %68 {offsets = [0, 96], sizes = [8, 32], strides = [1, 1]} : vector<8x128xf32> to vector<8x32xf32>
    %78 = math.tanh %77 : vector<8x32xf32>
    %79 = arith.mulf %75, %63 : vector<8x32xf32>
    %80 = arith.mulf %74, %78 : vector<8x32xf32>
    %81 = arith.addf %79, %80 : vector<8x32xf32>
    %82 = math.tanh %81 : vector<8x32xf32>
    %83 = arith.mulf %76, %82 : vector<8x32xf32>
    %c0_49 = arith.constant 0 : index
    %c0_50 = arith.constant 0 : index
    %84 = vector.load %arg9[%c0_49, %c0_50] : memref<8x32xf32, #tpu.memory_space<vmem>>, vector<8x32xf32>
    tpu.vector_store %arg9[%c0_49, %c0_50], %83 {strides = array<i32>} : memref<8x32xf32, #tpu.memory_space<vmem>>, vector<8x32xf32>,
    %c0_51 = arith.constant 0 : index
    %c0_52 = arith.constant 0 : index
    %85 = vector.load %arg10[%c0_51, %c0_52] : memref<8x32xf32, #tpu.memory_space<vmem>>, vector<8x32xf32>
    tpu.vector_store %arg10[%c0_51, %c0_52], %81 {strides = array<i32>} : memref<8x32xf32, #tpu.memory_space<vmem>>, vector<8x32xf32>,
    %c3_i32 = arith.constant 3 : i32
    %c0_53 = arith.constant 0 : index
    %c0_54 = arith.constant 0 : index
    %86 = vector.load %arg9[%c0_53, %c0_54] : memref<8x32xf32, #tpu.memory_space<vmem>>, vector<8x32xf32>
    %c0_55 = arith.constant 0 : index
    %c0_56 = arith.constant 0 : index
    %87 = vector.load %arg10[%c0_55, %c0_56] : memref<8x32xf32, #tpu.memory_space<vmem>>, vector<8x32xf32>
    %88 = arith.index_cast %c3_i32 : i32 to index
    %c0_57 = arith.constant 0 : index
    %c0_58 = arith.constant 0 : index
    %89 = vector.load %arg8[%88, %c0_57, %c0_58] : memref<8x8x128xf32, #tpu.memory_space<vmem>>, vector<1x8x128xf32>
    %90 = vector.shape_cast %89 : vector<1x8x128xf32> to vector<8x128xf32>
    %cst_59 = arith.constant dense<0.000000e+00> : vector<8x128xf32>
    %91 = tpu.matmul %86, %13, %cst_59 {dimension_numbers = #tpu.dot_dimension_numbers<[1], [0], [0], [1], [0, 0, 1, 1], [], []>} : vector<8x32xf32>, vector<32x128xf32>, vector<8x128xf32> -> vector<8x128xf32>
    %92 = arith.addf %90, %91 : vector<8x128xf32>
    %93 = arith.negf %92 : vector<8x128xf32>
    %94 = math.exp %93 : vector<8x128xf32>
    %cst_60 = arith.constant 1.000000e+00 : f32
    %95 = vector.broadcast %cst_60 : f32 to vector<8x128xf32>
    %96 = arith.addf %95, %94 : vector<8x128xf32>
    %97 = arith.divf %95, %96 : vector<8x128xf32>
    %98 = vector.extract_strided_slice %97 {offsets = [0, 0], sizes = [8, 32], strides = [1, 1]} : vector<8x128xf32> to vector<8x32xf32>
    %99 = vector.extract_strided_slice %97 {offsets = [0, 32], sizes = [8, 32], strides = [1, 1]} : vector<8x128xf32> to vector<8x32xf32>
    %100 = vector.extract_strided_slice %97 {offsets = [0, 64], sizes = [8, 32], strides = [1, 1]} : vector<8x128xf32> to vector<8x32xf32>
    %101 = vector.extract_strided_slice %92 {offsets = [0, 96], sizes = [8, 32], strides = [1, 1]} : vector<8x128xf32> to vector<8x32xf32>
    %102 = math.tanh %101 : vector<8x32xf32>
    %103 = arith.mulf %99, %87 : vector<8x32xf32>
    %104 = arith.mulf %98, %102 : vector<8x32xf32>
    %105 = arith.addf %103, %104 : vector<8x32xf32>
    %106 = math.tanh %105 : vector<8x32xf32>
    %107 = arith.mulf %100, %106 : vector<8x32xf32>
    %c0_61 = arith.constant 0 : index
    %c0_62 = arith.constant 0 : index
    %108 = vector.load %arg9[%c0_61, %c0_62] : memref<8x32xf32, #tpu.memory_space<vmem>>, vector<8x32xf32>
    tpu.vector_store %arg9[%c0_61, %c0_62], %107 {strides = array<i32>} : memref<8x32xf32, #tpu.memory_space<vmem>>, vector<8x32xf32>,
    %c0_63 = arith.constant 0 : index
    %c0_64 = arith.constant 0 : index
    %109 = vector.load %arg10[%c0_63, %c0_64] : memref<8x32xf32, #tpu.memory_space<vmem>>, vector<8x32xf32>
    tpu.vector_store %arg10[%c0_63, %c0_64], %105 {strides = array<i32>} : memref<8x32xf32, #tpu.memory_space<vmem>>, vector<8x32xf32>,
    %c4_i32 = arith.constant 4 : i32
    %c0_65 = arith.constant 0 : index
    %c0_66 = arith.constant 0 : index
    %110 = vector.load %arg9[%c0_65, %c0_66] : memref<8x32xf32, #tpu.memory_space<vmem>>, vector<8x32xf32>
    %c0_67 = arith.constant 0 : index
    %c0_68 = arith.constant 0 : index
    %111 = vector.load %arg10[%c0_67, %c0_68] : memref<8x32xf32, #tpu.memory_space<vmem>>, vector<8x32xf32>
    %112 = arith.index_cast %c4_i32 : i32 to index
    %c0_69 = arith.constant 0 : index
    %c0_70 = arith.constant 0 : index
    %113 = vector.load %arg8[%112, %c0_69, %c0_70] : memref<8x8x128xf32, #tpu.memory_space<vmem>>, vector<1x8x128xf32>
    %114 = vector.shape_cast %113 : vector<1x8x128xf32> to vector<8x128xf32>
    %cst_71 = arith.constant dense<0.000000e+00> : vector<8x128xf32>
    %115 = tpu.matmul %110, %13, %cst_71 {dimension_numbers = #tpu.dot_dimension_numbers<[1], [0], [0], [1], [0, 0, 1, 1], [], []>} : vector<8x32xf32>, vector<32x128xf32>, vector<8x128xf32> -> vector<8x128xf32>
    %116 = arith.addf %114, %115 : vector<8x128xf32>
    %117 = arith.negf %116 : vector<8x128xf32>
    %118 = math.exp %117 : vector<8x128xf32>
    %cst_72 = arith.constant 1.000000e+00 : f32
    %119 = vector.broadcast %cst_72 : f32 to vector<8x128xf32>
    %120 = arith.addf %119, %118 : vector<8x128xf32>
    %121 = arith.divf %119, %120 : vector<8x128xf32>
    %122 = vector.extract_strided_slice %121 {offsets = [0, 0], sizes = [8, 32], strides = [1, 1]} : vector<8x128xf32> to vector<8x32xf32>
    %123 = vector.extract_strided_slice %121 {offsets = [0, 32], sizes = [8, 32], strides = [1, 1]} : vector<8x128xf32> to vector<8x32xf32>
    %124 = vector.extract_strided_slice %121 {offsets = [0, 64], sizes = [8, 32], strides = [1, 1]} : vector<8x128xf32> to vector<8x32xf32>
    %125 = vector.extract_strided_slice %116 {offsets = [0, 96], sizes = [8, 32], strides = [1, 1]} : vector<8x128xf32> to vector<8x32xf32>
    %126 = math.tanh %125 : vector<8x32xf32>
    %127 = arith.mulf %123, %111 : vector<8x32xf32>
    %128 = arith.mulf %122, %126 : vector<8x32xf32>
    %129 = arith.addf %127, %128 : vector<8x32xf32>
    %130 = math.tanh %129 : vector<8x32xf32>
    %131 = arith.mulf %124, %130 : vector<8x32xf32>
    %c0_73 = arith.constant 0 : index
    %c0_74 = arith.constant 0 : index
    %132 = vector.load %arg9[%c0_73, %c0_74] : memref<8x32xf32, #tpu.memory_space<vmem>>, vector<8x32xf32>
    tpu.vector_store %arg9[%c0_73, %c0_74], %131 {strides = array<i32>} : memref<8x32xf32, #tpu.memory_space<vmem>>, vector<8x32xf32>,
    %c0_75 = arith.constant 0 : index
    %c0_76 = arith.constant 0 : index
    %133 = vector.load %arg10[%c0_75, %c0_76] : memref<8x32xf32, #tpu.memory_space<vmem>>, vector<8x32xf32>
    tpu.vector_store %arg10[%c0_75, %c0_76], %129 {strides = array<i32>} : memref<8x32xf32, #tpu.memory_space<vmem>>, vector<8x32xf32>,
    %c5_i32 = arith.constant 5 : i32
    %c0_77 = arith.constant 0 : index
    %c0_78 = arith.constant 0 : index
    %134 = vector.load %arg9[%c0_77, %c0_78] : memref<8x32xf32, #tpu.memory_space<vmem>>, vector<8x32xf32>
    %c0_79 = arith.constant 0 : index
    %c0_80 = arith.constant 0 : index
    %135 = vector.load %arg10[%c0_79, %c0_80] : memref<8x32xf32, #tpu.memory_space<vmem>>, vector<8x32xf32>
    %136 = arith.index_cast %c5_i32 : i32 to index
    %c0_81 = arith.constant 0 : index
    %c0_82 = arith.constant 0 : index
    %137 = vector.load %arg8[%136, %c0_81, %c0_82] : memref<8x8x128xf32, #tpu.memory_space<vmem>>, vector<1x8x128xf32>
    %138 = vector.shape_cast %137 : vector<1x8x128xf32> to vector<8x128xf32>
    %cst_83 = arith.constant dense<0.000000e+00> : vector<8x128xf32>
    %139 = tpu.matmul %134, %13, %cst_83 {dimension_numbers = #tpu.dot_dimension_numbers<[1], [0], [0], [1], [0, 0, 1, 1], [], []>} : vector<8x32xf32>, vector<32x128xf32>, vector<8x128xf32> -> vector<8x128xf32>
    %140 = arith.addf %138, %139 : vector<8x128xf32>
    %141 = arith.negf %140 : vector<8x128xf32>
    %142 = math.exp %141 : vector<8x128xf32>
    %cst_84 = arith.constant 1.000000e+00 : f32
    %143 = vector.broadcast %cst_84 : f32 to vector<8x128xf32>
    %144 = arith.addf %143, %142 : vector<8x128xf32>
    %145 = arith.divf %143, %144 : vector<8x128xf32>
    %146 = vector.extract_strided_slice %145 {offsets = [0, 0], sizes = [8, 32], strides = [1, 1]} : vector<8x128xf32> to vector<8x32xf32>
    %147 = vector.extract_strided_slice %145 {offsets = [0, 32], sizes = [8, 32], strides = [1, 1]} : vector<8x128xf32> to vector<8x32xf32>
    %148 = vector.extract_strided_slice %145 {offsets = [0, 64], sizes = [8, 32], strides = [1, 1]} : vector<8x128xf32> to vector<8x32xf32>
    %149 = vector.extract_strided_slice %140 {offsets = [0, 96], sizes = [8, 32], strides = [1, 1]} : vector<8x128xf32> to vector<8x32xf32>
    %150 = math.tanh %149 : vector<8x32xf32>
    %151 = arith.mulf %147, %135 : vector<8x32xf32>
    %152 = arith.mulf %146, %150 : vector<8x32xf32>
    %153 = arith.addf %151, %152 : vector<8x32xf32>
    %154 = math.tanh %153 : vector<8x32xf32>
    %155 = arith.mulf %148, %154 : vector<8x32xf32>
    %c0_85 = arith.constant 0 : index
    %c0_86 = arith.constant 0 : index
    %156 = vector.load %arg9[%c0_85, %c0_86] : memref<8x32xf32, #tpu.memory_space<vmem>>, vector<8x32xf32>
    tpu.vector_store %arg9[%c0_85, %c0_86], %155 {strides = array<i32>} : memref<8x32xf32, #tpu.memory_space<vmem>>, vector<8x32xf32>,
    %c0_87 = arith.constant 0 : index
    %c0_88 = arith.constant 0 : index
    %157 = vector.load %arg10[%c0_87, %c0_88] : memref<8x32xf32, #tpu.memory_space<vmem>>, vector<8x32xf32>
    tpu.vector_store %arg10[%c0_87, %c0_88], %153 {strides = array<i32>} : memref<8x32xf32, #tpu.memory_space<vmem>>, vector<8x32xf32>,
    %c6_i32 = arith.constant 6 : i32
    %c0_89 = arith.constant 0 : index
    %c0_90 = arith.constant 0 : index
    %158 = vector.load %arg9[%c0_89, %c0_90] : memref<8x32xf32, #tpu.memory_space<vmem>>, vector<8x32xf32>
    %c0_91 = arith.constant 0 : index
    %c0_92 = arith.constant 0 : index
    %159 = vector.load %arg10[%c0_91, %c0_92] : memref<8x32xf32, #tpu.memory_space<vmem>>, vector<8x32xf32>
    %160 = arith.index_cast %c6_i32 : i32 to index
    %c0_93 = arith.constant 0 : index
    %c0_94 = arith.constant 0 : index
    %161 = vector.load %arg8[%160, %c0_93, %c0_94] : memref<8x8x128xf32, #tpu.memory_space<vmem>>, vector<1x8x128xf32>
    %162 = vector.shape_cast %161 : vector<1x8x128xf32> to vector<8x128xf32>
    %cst_95 = arith.constant dense<0.000000e+00> : vector<8x128xf32>
    %163 = tpu.matmul %158, %13, %cst_95 {dimension_numbers = #tpu.dot_dimension_numbers<[1], [0], [0], [1], [0, 0, 1, 1], [], []>} : vector<8x32xf32>, vector<32x128xf32>, vector<8x128xf32> -> vector<8x128xf32>
    %164 = arith.addf %162, %163 : vector<8x128xf32>
    %165 = arith.negf %164 : vector<8x128xf32>
    %166 = math.exp %165 : vector<8x128xf32>
    %cst_96 = arith.constant 1.000000e+00 : f32
    %167 = vector.broadcast %cst_96 : f32 to vector<8x128xf32>
    %168 = arith.addf %167, %166 : vector<8x128xf32>
    %169 = arith.divf %167, %168 : vector<8x128xf32>
    %170 = vector.extract_strided_slice %169 {offsets = [0, 0], sizes = [8, 32], strides = [1, 1]} : vector<8x128xf32> to vector<8x32xf32>
    %171 = vector.extract_strided_slice %169 {offsets = [0, 32], sizes = [8, 32], strides = [1, 1]} : vector<8x128xf32> to vector<8x32xf32>
    %172 = vector.extract_strided_slice %169 {offsets = [0, 64], sizes = [8, 32], strides = [1, 1]} : vector<8x128xf32> to vector<8x32xf32>
    %173 = vector.extract_strided_slice %164 {offsets = [0, 96], sizes = [8, 32], strides = [1, 1]} : vector<8x128xf32> to vector<8x32xf32>
    %174 = math.tanh %173 : vector<8x32xf32>
    %175 = arith.mulf %171, %159 : vector<8x32xf32>
    %176 = arith.mulf %170, %174 : vector<8x32xf32>
    %177 = arith.addf %175, %176 : vector<8x32xf32>
    %178 = math.tanh %177 : vector<8x32xf32>
    %179 = arith.mulf %172, %178 : vector<8x32xf32>
    %c0_97 = arith.constant 0 : index
    %c0_98 = arith.constant 0 : index
    %180 = vector.load %arg9[%c0_97, %c0_98] : memref<8x32xf32, #tpu.memory_space<vmem>>, vector<8x32xf32>
    tpu.vector_store %arg9[%c0_97, %c0_98], %179 {strides = array<i32>} : memref<8x32xf32, #tpu.memory_space<vmem>>, vector<8x32xf32>,
    %c0_99 = arith.constant 0 : index
    %c0_100 = arith.constant 0 : index
    %181 = vector.load %arg10[%c0_99, %c0_100] : memref<8x32xf32, #tpu.memory_space<vmem>>, vector<8x32xf32>
    tpu.vector_store %arg10[%c0_99, %c0_100], %177 {strides = array<i32>} : memref<8x32xf32, #tpu.memory_space<vmem>>, vector<8x32xf32>,
    %c7_i32 = arith.constant 7 : i32
    %c0_101 = arith.constant 0 : index
    %c0_102 = arith.constant 0 : index
    %182 = vector.load %arg9[%c0_101, %c0_102] : memref<8x32xf32, #tpu.memory_space<vmem>>, vector<8x32xf32>
    %c0_103 = arith.constant 0 : index
    %c0_104 = arith.constant 0 : index
    %183 = vector.load %arg10[%c0_103, %c0_104] : memref<8x32xf32, #tpu.memory_space<vmem>>, vector<8x32xf32>
    %184 = arith.index_cast %c7_i32 : i32 to index
    %c0_105 = arith.constant 0 : index
    %c0_106 = arith.constant 0 : index
    %185 = vector.load %arg8[%184, %c0_105, %c0_106] : memref<8x8x128xf32, #tpu.memory_space<vmem>>, vector<1x8x128xf32>
    %186 = vector.shape_cast %185 : vector<1x8x128xf32> to vector<8x128xf32>
    %cst_107 = arith.constant dense<0.000000e+00> : vector<8x128xf32>
    %187 = tpu.matmul %182, %13, %cst_107 {dimension_numbers = #tpu.dot_dimension_numbers<[1], [0], [0], [1], [0, 0, 1, 1], [], []>} : vector<8x32xf32>, vector<32x128xf32>, vector<8x128xf32> -> vector<8x128xf32>
    %188 = arith.addf %186, %187 : vector<8x128xf32>
    %189 = arith.negf %188 : vector<8x128xf32>
    %190 = math.exp %189 : vector<8x128xf32>
    %cst_108 = arith.constant 1.000000e+00 : f32
    %191 = vector.broadcast %cst_108 : f32 to vector<8x128xf32>
    %192 = arith.addf %191, %190 : vector<8x128xf32>
    %193 = arith.divf %191, %192 : vector<8x128xf32>
    %194 = vector.extract_strided_slice %193 {offsets = [0, 0], sizes = [8, 32], strides = [1, 1]} : vector<8x128xf32> to vector<8x32xf32>
    %195 = vector.extract_strided_slice %193 {offsets = [0, 32], sizes = [8, 32], strides = [1, 1]} : vector<8x128xf32> to vector<8x32xf32>
    %196 = vector.extract_strided_slice %193 {offsets = [0, 64], sizes = [8, 32], strides = [1, 1]} : vector<8x128xf32> to vector<8x32xf32>
    %197 = vector.extract_strided_slice %188 {offsets = [0, 96], sizes = [8, 32], strides = [1, 1]} : vector<8x128xf32> to vector<8x32xf32>
    %198 = math.tanh %197 : vector<8x32xf32>
    %199 = arith.mulf %195, %183 : vector<8x32xf32>
    %200 = arith.mulf %194, %198 : vector<8x32xf32>
    %201 = arith.addf %199, %200 : vector<8x32xf32>
    %202 = math.tanh %201 : vector<8x32xf32>
    %203 = arith.mulf %196, %202 : vector<8x32xf32>
    %c0_109 = arith.constant 0 : index
    %c0_110 = arith.constant 0 : index
    %204 = vector.load %arg9[%c0_109, %c0_110] : memref<8x32xf32, #tpu.memory_space<vmem>>, vector<8x32xf32>
    tpu.vector_store %arg9[%c0_109, %c0_110], %203 {strides = array<i32>} : memref<8x32xf32, #tpu.memory_space<vmem>>, vector<8x32xf32>,
    %c0_111 = arith.constant 0 : index
    %c0_112 = arith.constant 0 : index
    %205 = vector.load %arg10[%c0_111, %c0_112] : memref<8x32xf32, #tpu.memory_space<vmem>>, vector<8x32xf32>
    tpu.vector_store %arg10[%c0_111, %c0_112], %201 {strides = array<i32>} : memref<8x32xf32, #tpu.memory_space<vmem>>, vector<8x32xf32>,
    %c8_i32 = arith.constant 8 : i32
    %c0_113 = arith.constant 0 : index
    %c0_114 = arith.constant 0 : index
    %206 = vector.load %arg9[%c0_113, %c0_114] : memref<8x32xf32, #tpu.memory_space<vmem>>, vector<8x32xf32>
    %c0_115 = arith.constant 0 : index
    %c0_116 = arith.constant 0 : index
    %207 = vector.load %arg5[%c0_115, %c0_116] : memref<32x128xf32, #tpu.memory_space<vmem>>, vector<32x128xf32>
    %cst_117 = arith.constant dense<0.000000e+00> : vector<8x128xf32>
    %208 = tpu.matmul %206, %207, %cst_117 {dimension_numbers = #tpu.dot_dimension_numbers<[1], [0], [0], [1], [0, 0, 1, 1], [], []>} : vector<8x32xf32>, vector<32x128xf32>, vector<8x128xf32> -> vector<8x128xf32>
    %c0_118 = arith.constant 0 : index
    %c0_119 = arith.constant 0 : index
    %209 = vector.load %arg6[%c0_118, %c0_119] : memref<1x128xf32, #tpu.memory_space<vmem>>, vector<1x128xf32>
    %210 = vector.broadcast %209 : vector<1x128xf32> to vector<8x128xf32>
    %211 = arith.addf %208, %210 : vector<8x128xf32>
    %212 = arith.negf %211 : vector<8x128xf32>
    %213 = math.exp %212 : vector<8x128xf32>
    %cst_120 = arith.constant 1.000000e+00 : f32
    %214 = vector.broadcast %cst_120 : f32 to vector<8x128xf32>
    %215 = arith.addf %214, %213 : vector<8x128xf32>
    %216 = arith.divf %214, %215 : vector<8x128xf32>
    %c0_121 = arith.constant 0 : index
    %c0_122 = arith.constant 0 : index
    %217 = vector.load %arg7[%c0_121, %c0_122] : memref<8x128xf32, #tpu.memory_space<vmem>>, vector<8x128xf32>
    tpu.vector_store %arg7[%c0_121, %c0_122], %216 {strides = array<i32>} : memref<8x128xf32, #tpu.memory_space<vmem>>, vector<8x128xf32>,
    return
  }
  func.func @transform_0(%arg0: i32) -> (i32, i32, i32) {
    %c0_i32 = arith.constant 0 : i32
    %c0_i32_0 = arith.constant 0 : i32
    %c0_i32_1 = arith.constant 0 : i32
    return %c0_i32, %arg0, %c0_i32_0 : i32, i32, i32
  }
  func.func @transform_1(%arg0: i32) -> (i32, i32) {
    %c0_i32 = arith.constant 0 : i32
    %c0_i32_0 = arith.constant 0 : i32
    %c0_i32_1 = arith.constant 0 : i32
    return %c0_i32, %c0_i32_0 : i32, i32
  }
  func.func @transform_2(%arg0: i32) -> (i32, i32) {
    %c0_i32 = arith.constant 0 : i32
    %c0_i32_0 = arith.constant 0 : i32
    %c0_i32_1 = arith.constant 0 : i32
    return %c0_i32, %c0_i32_0 : i32, i32
  }
  func.func @transform_3(%arg0: i32) -> (i32, i32) {
    %c0_i32 = arith.constant 0 : i32
    %c0_i32_0 = arith.constant 0 : i32
    %c0_i32_1 = arith.constant 0 : i32
    return %c0_i32, %c0_i32_0 : i32, i32
  }
  func.func @transform_4(%arg0: i32) -> (i32, i32) {
    %c0_i32 = arith.constant 0 : i32
    %c0_i32_0 = arith.constant 0 : i32
    %c0_i32_1 = arith.constant 0 : i32
    return %c0_i32, %c0_i32_0 : i32, i32
  }
  func.func @transform_5(%arg0: i32) -> (i32, i32) {
    %c0_i32 = arith.constant 0 : i32
    %c0_i32_0 = arith.constant 0 : i32
    %c0_i32_1 = arith.constant 0 : i32
    return %c0_i32, %c0_i32_0 : i32, i32
  }
  func.func @transform_6(%arg0: i32) -> (i32, i32) {
    %c0_i32 = arith.constant 0 : i32
    %c0_i32_0 = arith.constant 0 : i32
    return %arg0, %c0_i32 : i32, i32
  }
}

</mosaic_0001>

<llo_original>
// kernel: sentiment_lstm_forward.2
$region0: #{sentiment_lstm_forward.2}
  #allocation0 [shape = 'u32[]', space=smem, size = 0x4, offset = 0x4, fixed_abs, tag = 'smem constant byte address 0x4 - core index']
  #allocation1 [shape = 'u32[72,128]{1,0:T(1,128)}', space=vmem, size = 0x9000, scoped, tag = 'internal scratch']
  #allocation2 [shape = 'f32[8,8,128]{2,1,0:T(8,128)}', space=vmem, size = 0x8000, scoped, tag = 'scratch operand']
  #allocation3 [shape = 'f32[8,32]{1,0:T(8,128)}', space=vmem, size = 0x1000, scoped, tag = 'scratch operand']
  #allocation4 [shape = 'f32[8,32]{1,0:T(8,128)}', space=vmem, size = 0x1000, scoped, tag = 'scratch operand']
  %s0 = inlined_call_operand.vmem [shape: f32[8,8,16], index: 0, kind: input, shape index: {}]
  %s1 = inlined_call_operand.vmem [shape: f32[16,128], index: 1, kind: input, shape index: {}]
  %s2 = inlined_call_operand.vmem [shape: f32[1,128], index: 2, kind: input, shape index: {}]
  %s3 = inlined_call_operand.vmem [shape: f32[32,128], index: 3, kind: input, shape index: {}]
  %s4 = inlined_call_operand.vmem [shape: f32[8,8,32], index: 4, kind: output, shape index: {}]
  %s5 = sld [smem:[#allocation0]]
  $region26: #{sentiment_lstm_forward.2} parent=0
    _
  %s7 = ssub.s32 1, %s5
  %s8 = scalar_select 0, %s7, %s5
  // Predicated region
  $region2: #{sentiment_lstm_forward.2} parent=0 // pred_check
    _
  $region3: #{sentiment_lstm_forward.2} parent=0 // pred_check_branch
    %10 = sbr.rel (0) target = $region5
  $region4: #{sentiment_lstm_forward.2} parent=0 // pred_region
    _
  $region5: #{sentiment_lstm_forward.2} parent=0 // pred_fallthru
    _
  // Predicated region
  $region6: #{sentiment_lstm_forward.2} parent=0 // pred_check
    _
  $region7: #{sentiment_lstm_forward.2} parent=0 // pred_check_branch
    %12 = sbr.rel (0) target = $region9
  $region8: #{sentiment_lstm_forward.2} parent=0 // pred_region
    _
  $region9: #{sentiment_lstm_forward.2} parent=0 // pred_fallthru
    _
  // Predicated region
  $region10: #{sentiment_lstm_forward.2} parent=0 // pred_check
    _
  $region11: #{sentiment_lstm_forward.2} parent=0 // pred_check_branch
    %14 = sbr.rel (0) target = $region13
  $region12: #{sentiment_lstm_forward.2} parent=0 // pred_region
    _
  $region13: #{sentiment_lstm_forward.2} parent=0 // pred_fallthru
    _
  // Predicated region
  $region14: #{sentiment_lstm_forward.2} parent=0 // pred_check
    _
  $region15: #{sentiment_lstm_forward.2} parent=0 // pred_check_branch
    %16 = sbr.rel (0) target = $region17
  $region16: #{sentiment_lstm_forward.2} parent=0 // pred_region
    _
  $region17: #{sentiment_lstm_forward.2} parent=0 // pred_fallthru
    _
  %v17 = vld [vmem:[%s0] sm:$0xff]
  %v18 = vld [vmem:[%s0 + $0x8] sm:$0xff]
  %v19 = vld [vmem:[%s0 + $0x10] sm:$0xff]
  %v20 = vld [vmem:[%s0 + $0x18] sm:$0xff]
  %v21 = vld [vmem:[%s0 + $0x20] sm:$0xff]
  %v22 = vld [vmem:[%s0 + $0x28] sm:$0xff]
  %v23 = vld [vmem:[%s0 + $0x30] sm:$0xff]
  %v24 = vld [vmem:[%s0 + $0x38] sm:$0xff]
  %v25 = vld [vmem:[%s1] sm:$0xff]
  %v26 = vld [vmem:[%s1 + $0x8] sm:$0xff]
  %v27 = vld [vmem:[%s2] sm:$0x1]
  %v29 = vperm.slane %v27, 0
  %vm31 = vcmask 130048
  %v33 = vsel %vm31, %v17, 0
  %v36 = vsel %vm31, %v18, 0
  %v39 = vsel %vm31, %v19, 0
  %v42 = vsel %vm31, %v20, 0
  %v45 = vsel %vm31, %v21, 0
  %v48 = vsel %vm31, %v22, 0
  %v51 = vsel %vm31, %v23, 0
  %v54 = vsel %vm31, %v24, 0
  %56 = vmatpush.msra.mxu0 0.0
  %57 = vmatpush.msra.mxu0 0.0
  %58 = vmatpush.msra.mxu0 0.0
  %59 = vmatpush.msra.mxu0 0.0
  %60 = vmatpush.msra.mxu0 0.0
  %61 = vmatpush.msra.mxu0 0.0
  %62 = vmatpush.msra.mxu0 0.0
  %63 = vmatpush.msra.mxu0 0.0
  %64 = vmatpush.msra.mxu0 0.0
  %65 = vmatpush.msra.mxu0 0.0
  %66 = vmatpush.msra.mxu0 0.0
  %67 = vmatpush.msra.mxu0 0.0
  %68 = vmatpush.msra.mxu0 0.0
  %69 = vmatpush.msra.mxu0 0.0
  %70 = vmatpush.msra.mxu0 %v26
  %71 = vmatpush.msra.mxu0 %v25
  %72 = vmatmul.f32.gmra.mxu0 %v33
  %v73 = vpop.f32.mrf.mxu0
  %v74 = vadd.f32 %v29, %v73
  %75 = vmatmul.f32.gmra.mxu0 %v36
  %v76 = vpop.f32.mrf.mxu0
  %v77 = vadd.f32 %v29, %v76
  %78 = vmatmul.f32.gmra.mxu0 %v39
  %v79 = vpop.f32.mrf.mxu0
  %v80 = vadd.f32 %v29, %v79
  %81 = vmatmul.f32.gmra.mxu0 %v42
  %v82 = vpop.f32.mrf.mxu0
  %v83 = vadd.f32 %v29, %v82
  %84 = vmatmul.f32.gmra.mxu0 %v45
  %v85 = vpop.f32.mrf.mxu0
  %v86 = vadd.f32 %v29, %v85
  %87 = vmatmul.f32.gmra.mxu0 %v48
  %v88 = vpop.f32.mrf.mxu0
  %v89 = vadd.f32 %v29, %v88
  %90 = vmatmul.f32.gmra.mxu0 %v51
  %v91 = vpop.f32.mrf.mxu0
  %v92 = vadd.f32 %v29, %v91
  %93 = vmatmul.f32.gmra.mxu0 %v54
  %v94 = vpop.f32.mrf.mxu0
  %v95 = vadd.f32 %v29, %v94
  %96 = vdwg.mxu0
  %97 = vst [vmem:[#allocation2] sm:$0xff] %v74
  %98 = vst [vmem:[#allocation2 + $0x8] sm:$0xff] %v77
  %99 = vst [vmem:[#allocation2 + $0x10] sm:$0xff] %v80
  %100 = vst [vmem:[#allocation2 + $0x18] sm:$0xff] %v83
  %101 = vst [vmem:[#allocation2 + $0x20] sm:$0xff] %v86
  %102 = vst [vmem:[#allocation2 + $0x28] sm:$0xff] %v89
  %103 = vst [vmem:[#allocation2 + $0x30] sm:$0xff] %v92
  %104 = vst [vmem:[#allocation2 + $0x38] sm:$0xff] %v95
  %vm105 = vcmask 261120
  %106 = vst.msk [vmem:[#allocation3] sm:$0xff] %vm105, 0.0
  %107 = vst.msk [vmem:[#allocation4] sm:$0xff] %vm105, 0.0
  %v108 = vld [vmem:[%s3] sm:$0xff]
  %v109 = vld [vmem:[%s3 + $0x8] sm:$0xff]
  %v110 = vld [vmem:[%s3 + $0x10] sm:$0xff]
  %v111 = vld [vmem:[%s3 + $0x18] sm:$0xff]
  %v112 = vld [vmem:[#allocation3] sm:$0xff]
  %v113 = vld [vmem:[#allocation4] sm:$0xff]
  %v114 = vld [vmem:[#allocation2] sm:$0xff]
  %v116 = vsel %vm105, %v112, 0
  %118 = vmatpush.msra.mxu0 0.0
  %119 = vmatpush.msra.mxu0 0.0
  %120 = vmatpush.msra.mxu0 0.0
  %121 = vmatpush.msra.mxu0 0.0
  %122 = vmatpush.msra.mxu0 0.0
  %123 = vmatpush.msra.mxu0 0.0
  %124 = vmatpush.msra.mxu0 0.0
  %125 = vmatpush.msra.mxu0 0.0
  %126 = vmatpush.msra.mxu0 0.0
  %127 = vmatpush.msra.mxu0 0.0
  %128 = vmatpush.msra.mxu0 0.0
  %129 = vmatpush.msra.mxu0 0.0
  %130 = vmatpush.msra.mxu0 %v111
  %131 = vmatpush.msra.mxu0 %v110
  %132 = vmatpush.msra.mxu0 %v109
  %133 = vmatpush.msra.mxu0 %v108
  %134 = vmatmul.f32.gmra.mxu0 %v116
  %v135 = vpop.f32.mrf.mxu0
  %v136 = vadd.f32 0.0, %v135
  %137 = vdwg.mxu0
  %v138 = vadd.f32 %v114, %v136
  %v139 = vxor.u32 %v138, 2147483648
  %v140 = vmul.f32 %v139, 1.442695
  %v141 = vpow.pop %v140
  %v142 = vadd.f32 %v141, 1.0
  %v143 = vrcp.pop %v142
  %v144 = vmul.f32 %v142, %v143
  %v145 = vsub.f32 1.0, %v144
  %v146 = vmul.f32 %v143, %v145
  %v147 = vadd.f32 %v143, %v146
  %vm148 = vweird.f32 %v142
  %vm149 = vweird.f32 %v143
  %vm150 = vmor %vm148, %vm149
  %v151 = vsel %vm150, %v143, %v147
  %v152 = vand.u32 2147483647, %v142
  %vm153 = vcmp.eq.f32.partialorder %v152, 8.507059e+37
  %v154 = vand.u32 %v142, 2147483648
  %v155 = vor.u32 1.1754944e-38, %v154
  %v156 = vsel %vm153, %v155, %v151
  %v157 = vmul.f32 1.0, %v156
  %v158 = vtanh.pop %v138
  %160 = vrot.lane.b32.xlu0 %v113, 32
  %v161 = vpop.permute.xlu0 %160
  %v163 = vmul.f32 %v157, %v161
  %165 = vrot.lane.b32.xlu0 %v158, 32
  %v166 = vpop.permute.xlu0 %165
  %v168 = vmul.f32 %v157, %v166
  %170 = vrot.lane.b32.xlu0 %v168, 32
  %v171 = vpop.permute.xlu0 %170
  %v173 = vadd.f32 %v163, %v171
  %v174 = vtanh.pop %v173
  %176 = vrot.lane.b32.xlu0 %v174, 32
  %v177 = vpop.permute.xlu0 %176
  %v179 = vmul.f32 %v157, %v177
  %181 = vrot.lane.b32.xlu0 %v179, 64
  %v182 = vpop.permute.xlu0 %181
  %184 = vst.msk [vmem:[#allocation3] sm:$0xff] %vm105, %v182
  %186 = vrot.lane.b32.xlu0 %v173, 96
  %v187 = vpop.permute.xlu0 %186
  %189 = vst.msk [vmem:[#allocation4] sm:$0xff] %vm105, %v187
  %190 = vst.msk [vmem:[%s4] sm:$0xff] %vm105, %v182
  %v191 = vld [vmem:[#allocation3] sm:$0xff]
  %v192 = vld [vmem:[#allocation4] sm:$0xff]
  %s193 = scalar_lea.vmem [#allocation2], 8
  %v194 = vld [vmem:[%s193] sm:$0xff]
  %v196 = vsel %vm105, %v191, 0
  %198 = vmatpush.msra.mxu0 0.0
  %199 = vmatpush.msra.mxu0 0.0
  %200 = vmatpush.msra.mxu0 0.0
  %201 = vmatpush.msra.mxu0 0.0
  %202 = vmatpush.msra.mxu0 0.0
  %203 = vmatpush.msra.mxu0 0.0
  %204 = vmatpush.msra.mxu0 0.0
  %205 = vmatpush.msra.mxu0 0.0
  %206 = vmatpush.msra.mxu0 0.0
  %207 = vmatpush.msra.mxu0 0.0
  %208 = vmatpush.msra.mxu0 0.0
  %209 = vmatpush.msra.mxu0 0.0
  %210 = vmatpush.msra.mxu0 %v111
  %211 = vmatpush.msra.mxu0 %v110
  %212 = vmatpush.msra.mxu0 %v109
  %213 = vmatpush.msra.mxu0 %v108
  %214 = vmatmul.f32.gmra.mxu0 %v196
  %v215 = vpop.f32.mrf.mxu0
  %v216 = vadd.f32 0.0, %v215
  %217 = vdwg.mxu0
  %v218 = vadd.f32 %v194, %v216
  %v219 = vxor.u32 %v218, 2147483648
  %v220 = vmul.f32 %v219, 1.442695
  %v221 = vpow.pop %v220
  %v222 = vadd.f32 %v221, 1.0
  %v223 = vrcp.pop %v222
  %v224 = vmul.f32 %v222, %v223
  %v225 = vsub.f32 1.0, %v224
  %v226 = vmul.f32 %v223, %v225
  %v227 = vadd.f32 %v223, %v226
  %vm228 = vweird.f32 %v222
  %vm229 = vweird.f32 %v223
  %vm230 = vmor %vm228, %vm229
  %v231 = vsel %vm230, %v223, %v227
  %v232 = vand.u32 2147483647, %v222
  %vm233 = vcmp.eq.f32.partialorder %v232, 8.507059e+37
  %v234 = vand.u32 %v222, 2147483648
  %v235 = vor.u32 1.1754944e-38, %v234
  %v236 = vsel %vm233, %v235, %v231
  %v237 = vmul.f32 1.0, %v236
  %v238 = vtanh.pop %v218
  %240 = vrot.lane.b32.xlu0 %v192, 32
  %v241 = vpop.permute.xlu0 %240
  %v243 = vmul.f32 %v237, %v241
  %245 = vrot.lane.b32.xlu0 %v238, 32
  %v246 = vpop.permute.xlu0 %245
  %v248 = vmul.f32 %v237, %v246
  %250 = vrot.lane.b32.xlu0 %v248, 32
  %v251 = vpop.permute.xlu0 %250
  %v253 = vadd.f32 %v243, %v251
  %v254 = vtanh.pop %v253
  %256 = vrot.lane.b32.xlu0 %v254, 32
  %v257 = vpop.permute.xlu0 %256
  %v259 = vmul.f32 %v237, %v257
  %261 = vrot.lane.b32.xlu0 %v259, 64
  %v262 = vpop.permute.xlu0 %261
  %264 = vst.msk [vmem:[#allocation3] sm:$0xff] %vm105, %v262
  %266 = vrot.lane.b32.xlu0 %v253, 96
  %v267 = vpop.permute.xlu0 %266
  %269 = vst.msk [vmem:[#allocation4] sm:$0xff] %vm105, %v267
  %s270 = scalar_lea.vmem %s4, 8
  %271 = vst.msk [vmem:[%s270] sm:$0xff] %vm105, %v262
  %v272 = vld [vmem:[#allocation3] sm:$0xff]
  %v273 = vld [vmem:[#allocation4] sm:$0xff]
  %s274 = scalar_lea.vmem [#allocation2], 16
  %v275 = vld [vmem:[%s274] sm:$0xff]
  %v277 = vsel %vm105, %v272, 0
  %279 = vmatpush.msra.mxu0 0.0
  %280 = vmatpush.msra.mxu0 0.0
  %281 = vmatpush.msra.mxu0 0.0
  %282 = vmatpush.msra.mxu0 0.0
  %283 = vmatpush.msra.mxu0 0.0
  %284 = vmatpush.msra.mxu0 0.0
  %285 = vmatpush.msra.mxu0 0.0
  %286 = vmatpush.msra.mxu0 0.0
  %287 = vmatpush.msra.mxu0 0.0
  %288 = vmatpush.msra.mxu0 0.0
  %289 = vmatpush.msra.mxu0 0.0
  %290 = vmatpush.msra.mxu0 0.0
  %291 = vmatpush.msra.mxu0 %v111
  %292 = vmatpush.msra.mxu0 %v110
  %293 = vmatpush.msra.mxu0 %v109
  %294 = vmatpush.msra.mxu0 %v108
  %295 = vmatmul.f32.gmra.mxu0 %v277
  %v296 = vpop.f32.mrf.mxu0
  %v297 = vadd.f32 0.0, %v296
  %298 = vdwg.mxu0
  %v299 = vadd.f32 %v275, %v297
  %v300 = vxor.u32 %v299, 2147483648
  %v301 = vmul.f32 %v300, 1.442695
  %v302 = vpow.pop %v301
  %v303 = vadd.f32 %v302, 1.0
  %v304 = vrcp.pop %v303
  %v305 = vmul.f32 %v303, %v304
  %v306 = vsub.f32 1.0, %v305
  %v307 = vmul.f32 %v304, %v306
  %v308 = vadd.f32 %v304, %v307
  %vm309 = vweird.f32 %v303
  %vm310 = vweird.f32 %v304
  %vm311 = vmor %vm309, %vm310
  %v312 = vsel %vm311, %v304, %v308
  %v313 = vand.u32 2147483647, %v303
  %vm314 = vcmp.eq.f32.partialorder %v313, 8.507059e+37
  %v315 = vand.u32 %v303, 2147483648
  %v316 = vor.u32 1.1754944e-38, %v315
  %v317 = vsel %vm314, %v316, %v312
  %v318 = vmul.f32 1.0, %v317
  %v319 = vtanh.pop %v299
  %321 = vrot.lane.b32.xlu0 %v273, 32
  %v322 = vpop.permute.xlu0 %321
  %v324 = vmul.f32 %v318, %v322
  %326 = vrot.lane.b32.xlu0 %v319, 32
  %v327 = vpop.permute.xlu0 %326
  %v329 = vmul.f32 %v318, %v327
  %331 = vrot.lane.b32.xlu0 %v329, 32
  %v332 = vpop.permute.xlu0 %331
  %v334 = vadd.f32 %v324, %v332
  %v335 = vtanh.pop %v334
  %337 = vrot.lane.b32.xlu0 %v335, 32
  %v338 = vpop.permute.xlu0 %337
  %v340 = vmul.f32 %v318, %v338
  %342 = vrot.lane.b32.xlu0 %v340, 64
  %v343 = vpop.permute.xlu0 %342
  %345 = vst.msk [vmem:[#allocation3] sm:$0xff] %vm105, %v343
  %347 = vrot.lane.b32.xlu0 %v334, 96
  %v348 = vpop.permute.xlu0 %347
  %350 = vst.msk [vmem:[#allocation4] sm:$0xff] %vm105, %v348
  %s351 = scalar_lea.vmem %s4, 16
  %352 = vst.msk [vmem:[%s351] sm:$0xff] %vm105, %v343
  %v353 = vld [vmem:[#allocation3] sm:$0xff]
  %v354 = vld [vmem:[#allocation4] sm:$0xff]
  %s355 = scalar_lea.vmem [#allocation2], 24
  %v356 = vld [vmem:[%s355] sm:$0xff]
  %v358 = vsel %vm105, %v353, 0
  %360 = vmatpush.msra.mxu0 0.0
  %361 = vmatpush.msra.mxu0 0.0
  %362 = vmatpush.msra.mxu0 0.0
  %363 = vmatpush.msra.mxu0 0.0
  %364 = vmatpush.msra.mxu0 0.0
  %365 = vmatpush.msra.mxu0 0.0
  %366 = vmatpush.msra.mxu0 0.0
  %367 = vmatpush.msra.mxu0 0.0
  %368 = vmatpush.msra.mxu0 0.0
  %369 = vmatpush.msra.mxu0 0.0
  %370 = vmatpush.msra.mxu0 0.0
  %371 = vmatpush.msra.mxu0 0.0
  %372 = vmatpush.msra.mxu0 %v111
  %373 = vmatpush.msra.mxu0 %v110
  %374 = vmatpush.msra.mxu0 %v109
  %375 = vmatpush.msra.mxu0 %v108
  %376 = vmatmul.f32.gmra.mxu0 %v358
  %v377 = vpop.f32.mrf.mxu0
  %v378 = vadd.f32 0.0, %v377
  %379 = vdwg.mxu0
  %v380 = vadd.f32 %v356, %v378
  %v381 = vxor.u32 %v380, 2147483648
  %v382 = vmul.f32 %v381, 1.442695
  %v383 = vpow.pop %v382
  %v384 = vadd.f32 %v383, 1.0
  %v385 = vrcp.pop %v384
  %v386 = vmul.f32 %v384, %v385
  %v387 = vsub.f32 1.0, %v386
  %v388 = vmul.f32 %v385, %v387
  %v389 = vadd.f32 %v385, %v388
  %vm390 = vweird.f32 %v384
  %vm391 = vweird.f32 %v385
  %vm392 = vmor %vm390, %vm391
  %v393 = vsel %vm392, %v385, %v389
  %v394 = vand.u32 2147483647, %v384
  %vm395 = vcmp.eq.f32.partialorder %v394, 8.507059e+37
  %v396 = vand.u32 %v384, 2147483648
  %v397 = vor.u32 1.1754944e-38, %v396
  %v398 = vsel %vm395, %v397, %v393
  %v399 = vmul.f32 1.0, %v398
  %v400 = vtanh.pop %v380
  %402 = vrot.lane.b32.xlu0 %v354, 32
  %v403 = vpop.permute.xlu0 %402
  %v405 = vmul.f32 %v399, %v403
  %407 = vrot.lane.b32.xlu0 %v400, 32
  %v408 = vpop.permute.xlu0 %407
  %v410 = vmul.f32 %v399, %v408
  %412 = vrot.lane.b32.xlu0 %v410, 32
  %v413 = vpop.permute.xlu0 %412
  %v415 = vadd.f32 %v405, %v413
  %v416 = vtanh.pop %v415
  %418 = vrot.lane.b32.xlu0 %v416, 32
  %v419 = vpop.permute.xlu0 %418
  %v421 = vmul.f32 %v399, %v419
  %423 = vrot.lane.b32.xlu0 %v421, 64
  %v424 = vpop.permute.xlu0 %423
  %426 = vst.msk [vmem:[#allocation3] sm:$0xff] %vm105, %v424
  %428 = vrot.lane.b32.xlu0 %v415, 96
  %v429 = vpop.permute.xlu0 %428
  %431 = vst.msk [vmem:[#allocation4] sm:$0xff] %vm105, %v429
  %s432 = scalar_lea.vmem %s4, 24
  %433 = vst.msk [vmem:[%s432] sm:$0xff] %vm105, %v424
  %v434 = vld [vmem:[#allocation3] sm:$0xff]
  %v435 = vld [vmem:[#allocation4] sm:$0xff]
  %s436 = scalar_lea.vmem [#allocation2], 32
  %v437 = vld [vmem:[%s436] sm:$0xff]
  %v439 = vsel %vm105, %v434, 0
  %441 = vmatpush.msra.mxu0 0.0
  %442 = vmatpush.msra.mxu0 0.0
  %443 = vmatpush.msra.mxu0 0.0
  %444 = vmatpush.msra.mxu0 0.0
  %445 = vmatpush.msra.mxu0 0.0
  %446 = vmatpush.msra.mxu0 0.0
  %447 = vmatpush.msra.mxu0 0.0
  %448 = vmatpush.msra.mxu0 0.0
  %449 = vmatpush.msra.mxu0 0.0
  %450 = vmatpush.msra.mxu0 0.0
  %451 = vmatpush.msra.mxu0 0.0
  %452 = vmatpush.msra.mxu0 0.0
  %453 = vmatpush.msra.mxu0 %v111
  %454 = vmatpush.msra.mxu0 %v110
  %455 = vmatpush.msra.mxu0 %v109
  %456 = vmatpush.msra.mxu0 %v108
  %457 = vmatmul.f32.gmra.mxu0 %v439
  %v458 = vpop.f32.mrf.mxu0
  %v459 = vadd.f32 0.0, %v458
  %460 = vdwg.mxu0
  %v461 = vadd.f32 %v437, %v459
  %v462 = vxor.u32 %v461, 2147483648
  %v463 = vmul.f32 %v462, 1.442695
  %v464 = vpow.pop %v463
  %v465 = vadd.f32 %v464, 1.0
  %v466 = vrcp.pop %v465
  %v467 = vmul.f32 %v465, %v466
  %v468 = vsub.f32 1.0, %v467
  %v469 = vmul.f32 %v466, %v468
  %v470 = vadd.f32 %v466, %v469
  %vm471 = vweird.f32 %v465
  %vm472 = vweird.f32 %v466
  %vm473 = vmor %vm471, %vm472
  %v474 = vsel %vm473, %v466, %v470
  %v475 = vand.u32 2147483647, %v465
  %vm476 = vcmp.eq.f32.partialorder %v475, 8.507059e+37
  %v477 = vand.u32 %v465, 2147483648
  %v478 = vor.u32 1.1754944e-38, %v477
  %v479 = vsel %vm476, %v478, %v474
  %v480 = vmul.f32 1.0, %v479
  %v481 = vtanh.pop %v461
  %483 = vrot.lane.b32.xlu0 %v435, 32
  %v484 = vpop.permute.xlu0 %483
  %v486 = vmul.f32 %v480, %v484
  %488 = vrot.lane.b32.xlu0 %v481, 32
  %v489 = vpop.permute.xlu0 %488
  %v491 = vmul.f32 %v480, %v489
  %493 = vrot.lane.b32.xlu0 %v491, 32
  %v494 = vpop.permute.xlu0 %493
  %v496 = vadd.f32 %v486, %v494
  %v497 = vtanh.pop %v496
  %499 = vrot.lane.b32.xlu0 %v497, 32
  %v500 = vpop.permute.xlu0 %499
  %v502 = vmul.f32 %v480, %v500
  %504 = vrot.lane.b32.xlu0 %v502, 64
  %v505 = vpop.permute.xlu0 %504
  %507 = vst.msk [vmem:[#allocation3] sm:$0xff] %vm105, %v505
  %509 = vrot.lane.b32.xlu0 %v496, 96
  %v510 = vpop.permute.xlu0 %509
  %512 = vst.msk [vmem:[#allocation4] sm:$0xff] %vm105, %v510
  %s513 = scalar_lea.vmem %s4, 32
  %514 = vst.msk [vmem:[%s513] sm:$0xff] %vm105, %v505
  %v515 = vld [vmem:[#allocation3] sm:$0xff]
  %v516 = vld [vmem:[#allocation4] sm:$0xff]
  %s517 = scalar_lea.vmem [#allocation2], 40
  %v518 = vld [vmem:[%s517] sm:$0xff]
  %v520 = vsel %vm105, %v515, 0
  %522 = vmatpush.msra.mxu0 0.0
  %523 = vmatpush.msra.mxu0 0.0
  %524 = vmatpush.msra.mxu0 0.0
  %525 = vmatpush.msra.mxu0 0.0
  %526 = vmatpush.msra.mxu0 0.0
  %527 = vmatpush.msra.mxu0 0.0
  %528 = vmatpush.msra.mxu0 0.0
  %529 = vmatpush.msra.mxu0 0.0
  %530 = vmatpush.msra.mxu0 0.0
  %531 = vmatpush.msra.mxu0 0.0
  %532 = vmatpush.msra.mxu0 0.0
  %533 = vmatpush.msra.mxu0 0.0
  %534 = vmatpush.msra.mxu0 %v111
  %535 = vmatpush.msra.mxu0 %v110
  %536 = vmatpush.msra.mxu0 %v109
  %537 = vmatpush.msra.mxu0 %v108
  %538 = vmatmul.f32.gmra.mxu0 %v520
  %v539 = vpop.f32.mrf.mxu0
  %v540 = vadd.f32 0.0, %v539
  %541 = vdwg.mxu0
  %v542 = vadd.f32 %v518, %v540
  %v543 = vxor.u32 %v542, 2147483648
  %v544 = vmul.f32 %v543, 1.442695
  %v545 = vpow.pop %v544
  %v546 = vadd.f32 %v545, 1.0
  %v547 = vrcp.pop %v546
  %v548 = vmul.f32 %v546, %v547
  %v549 = vsub.f32 1.0, %v548
  %v550 = vmul.f32 %v547, %v549
  %v551 = vadd.f32 %v547, %v550
  %vm552 = vweird.f32 %v546
  %vm553 = vweird.f32 %v547
  %vm554 = vmor %vm552, %vm553
  %v555 = vsel %vm554, %v547, %v551
  %v556 = vand.u32 2147483647, %v546
  %vm557 = vcmp.eq.f32.partialorder %v556, 8.507059e+37
  %v558 = vand.u32 %v546, 2147483648
  %v559 = vor.u32 1.1754944e-38, %v558
  %v560 = vsel %vm557, %v559, %v555
  %v561 = vmul.f32 1.0, %v560
  %v562 = vtanh.pop %v542
  %564 = vrot.lane.b32.xlu0 %v516, 32
  %v565 = vpop.permute.xlu0 %564
  %v567 = vmul.f32 %v561, %v565
  %569 = vrot.lane.b32.xlu0 %v562, 32
  %v570 = vpop.permute.xlu0 %569
  %v572 = vmul.f32 %v561, %v570
  %574 = vrot.lane.b32.xlu0 %v572, 32
  %v575 = vpop.permute.xlu0 %574
  %v577 = vadd.f32 %v567, %v575
  %v578 = vtanh.pop %v577
  %580 = vrot.lane.b32.xlu0 %v578, 32
  %v581 = vpop.permute.xlu0 %580
  %v583 = vmul.f32 %v561, %v581
  %585 = vrot.lane.b32.xlu0 %v583, 64
  %v586 = vpop.permute.xlu0 %585
  %588 = vst.msk [vmem:[#allocation3] sm:$0xff] %vm105, %v586
  %590 = vrot.lane.b32.xlu0 %v577, 96
  %v591 = vpop.permute.xlu0 %590
  %593 = vst.msk [vmem:[#allocation4] sm:$0xff] %vm105, %v591
  %s594 = scalar_lea.vmem %s4, 40
  %595 = vst.msk [vmem:[%s594] sm:$0xff] %vm105, %v586
  %v596 = vld [vmem:[#allocation3] sm:$0xff]
  %v597 = vld [vmem:[#allocation4] sm:$0xff]
  %s598 = scalar_lea.vmem [#allocation2], 48
  %v599 = vld [vmem:[%s598] sm:$0xff]
  %v601 = vsel %vm105, %v596, 0
  %603 = vmatpush.msra.mxu0 0.0
  %604 = vmatpush.msra.mxu0 0.0
  %605 = vmatpush.msra.mxu0 0.0
  %606 = vmatpush.msra.mxu0 0.0
  %607 = vmatpush.msra.mxu0 0.0
  %608 = vmatpush.msra.mxu0 0.0
  %609 = vmatpush.msra.mxu0 0.0
  %610 = vmatpush.msra.mxu0 0.0
  %611 = vmatpush.msra.mxu0 0.0
  %612 = vmatpush.msra.mxu0 0.0
  %613 = vmatpush.msra.mxu0 0.0
  %614 = vmatpush.msra.mxu0 0.0
  %615 = vmatpush.msra.mxu0 %v111
  %616 = vmatpush.msra.mxu0 %v110
  %617 = vmatpush.msra.mxu0 %v109
  %618 = vmatpush.msra.mxu0 %v108
  %619 = vmatmul.f32.gmra.mxu0 %v601
  %v620 = vpop.f32.mrf.mxu0
  %v621 = vadd.f32 0.0, %v620
  %622 = vdwg.mxu0
  %v623 = vadd.f32 %v599, %v621
  %v624 = vxor.u32 %v623, 2147483648
  %v625 = vmul.f32 %v624, 1.442695
  %v626 = vpow.pop %v625
  %v627 = vadd.f32 %v626, 1.0
  %v628 = vrcp.pop %v627
  %v629 = vmul.f32 %v627, %v628
  %v630 = vsub.f32 1.0, %v629
  %v631 = vmul.f32 %v628, %v630
  %v632 = vadd.f32 %v628, %v631
  %vm633 = vweird.f32 %v627
  %vm634 = vweird.f32 %v628
  %vm635 = vmor %vm633, %vm634
  %v636 = vsel %vm635, %v628, %v632
  %v637 = vand.u32 2147483647, %v627
  %vm638 = vcmp.eq.f32.partialorder %v637, 8.507059e+37
  %v639 = vand.u32 %v627, 2147483648
  %v640 = vor.u32 1.1754944e-38, %v639
  %v641 = vsel %vm638, %v640, %v636
  %v642 = vmul.f32 1.0, %v641
  %v643 = vtanh.pop %v623
  %645 = vrot.lane.b32.xlu0 %v597, 32
  %v646 = vpop.permute.xlu0 %645
  %v648 = vmul.f32 %v642, %v646
  %650 = vrot.lane.b32.xlu0 %v643, 32
  %v651 = vpop.permute.xlu0 %650
  %v653 = vmul.f32 %v642, %v651
  %655 = vrot.lane.b32.xlu0 %v653, 32
  %v656 = vpop.permute.xlu0 %655
  %v658 = vadd.f32 %v648, %v656
  %v659 = vtanh.pop %v658
  %661 = vrot.lane.b32.xlu0 %v659, 32
  %v662 = vpop.permute.xlu0 %661
  %v664 = vmul.f32 %v642, %v662
  %666 = vrot.lane.b32.xlu0 %v664, 64
  %v667 = vpop.permute.xlu0 %666
  %669 = vst.msk [vmem:[#allocation3] sm:$0xff] %vm105, %v667
  %671 = vrot.lane.b32.xlu0 %v658, 96
  %v672 = vpop.permute.xlu0 %671
  %674 = vst.msk [vmem:[#allocation4] sm:$0xff] %vm105, %v672
  %s675 = scalar_lea.vmem %s4, 48
  %676 = vst.msk [vmem:[%s675] sm:$0xff] %vm105, %v667
  %v677 = vld [vmem:[#allocation3] sm:$0xff]
  %v678 = vld [vmem:[#allocation4] sm:$0xff]
  %s679 = scalar_lea.vmem [#allocation2], 56
  %v680 = vld [vmem:[%s679] sm:$0xff]
  %v682 = vsel %vm105, %v677, 0
  %684 = vmatpush.msra.mxu0 0.0
  %685 = vmatpush.msra.mxu0 0.0
  %686 = vmatpush.msra.mxu0 0.0
  %687 = vmatpush.msra.mxu0 0.0
  %688 = vmatpush.msra.mxu0 0.0
  %689 = vmatpush.msra.mxu0 0.0
  %690 = vmatpush.msra.mxu0 0.0
  %691 = vmatpush.msra.mxu0 0.0
  %692 = vmatpush.msra.mxu0 0.0
  %693 = vmatpush.msra.mxu0 0.0
  %694 = vmatpush.msra.mxu0 0.0
  %695 = vmatpush.msra.mxu0 0.0
  %696 = vmatpush.msra.mxu0 %v111
  %697 = vmatpush.msra.mxu0 %v110
  %698 = vmatpush.msra.mxu0 %v109
  %699 = vmatpush.msra.mxu0 %v108
  %700 = vmatmul.f32.gmra.mxu0 %v682
  %v701 = vpop.f32.mrf.mxu0
  %v702 = vadd.f32 0.0, %v701
  %703 = vdwg.mxu0
  %v704 = vadd.f32 %v680, %v702
  %v705 = vxor.u32 %v704, 2147483648
  %v706 = vmul.f32 %v705, 1.442695
  %v707 = vpow.pop %v706
  %v708 = vadd.f32 %v707, 1.0
  %v709 = vrcp.pop %v708
  %v710 = vmul.f32 %v708, %v709
  %v711 = vsub.f32 1.0, %v710
  %v712 = vmul.f32 %v709, %v711
  %v713 = vadd.f32 %v709, %v712
  %vm714 = vweird.f32 %v708
  %vm715 = vweird.f32 %v709
  %vm716 = vmor %vm714, %vm715
  %v717 = vsel %vm716, %v709, %v713
  %v718 = vand.u32 2147483647, %v708
  %vm719 = vcmp.eq.f32.partialorder %v718, 8.507059e+37
  %v720 = vand.u32 %v708, 2147483648
  %v721 = vor.u32 1.1754944e-38, %v720
  %v722 = vsel %vm719, %v721, %v717
  %v723 = vmul.f32 1.0, %v722
  %v724 = vtanh.pop %v704
  %726 = vrot.lane.b32.xlu0 %v678, 32
  %v727 = vpop.permute.xlu0 %726
  %v729 = vmul.f32 %v723, %v727
  %731 = vrot.lane.b32.xlu0 %v724, 32
  %v732 = vpop.permute.xlu0 %731
  %v734 = vmul.f32 %v723, %v732
  %736 = vrot.lane.b32.xlu0 %v734, 32
  %v737 = vpop.permute.xlu0 %736
  %v739 = vadd.f32 %v729, %v737
  %v740 = vtanh.pop %v739
  %742 = vrot.lane.b32.xlu0 %v740, 32
  %v743 = vpop.permute.xlu0 %742
  %v745 = vmul.f32 %v723, %v743
  %747 = vrot.lane.b32.xlu0 %v745, 64
  %v748 = vpop.permute.xlu0 %747
  %750 = vst.msk [vmem:[#allocation3] sm:$0xff] %vm105, %v748
  %752 = vrot.lane.b32.xlu0 %v739, 96
  %v753 = vpop.permute.xlu0 %752
  %755 = vst.msk [vmem:[#allocation4] sm:$0xff] %vm105, %v753
  %s756 = scalar_lea.vmem %s4, 56
  %757 = vst.msk [vmem:[%s756] sm:$0xff] %vm105, %v748
  // Predicated region
  $region18: #{sentiment_lstm_forward.2} parent=0 // pred_check
    _
  $region19: #{sentiment_lstm_forward.2} parent=0 // pred_check_branch
    %759 = sbr.rel (0) target = $region21
  $region20: #{sentiment_lstm_forward.2} parent=0 // pred_region
    _
  $region21: #{sentiment_lstm_forward.2} parent=0 // pred_fallthru
    _
  // Predicated region
  $region22: #{sentiment_lstm_forward.2} parent=0 // pred_check
    _
  $region23: #{sentiment_lstm_forward.2} parent=0 // pred_check_branch
    %761 = sbr.rel (0) target = $region25
  $region24: #{sentiment_lstm_forward.2} parent=0 // pred_region
    _
  $region25: #{sentiment_lstm_forward.2} parent=0 // pred_fallthru
    _

// kernel: sentiment_lstm_forward.3
$region0: #{sentiment_lstm_forward.3}
  #allocation0 [shape = 'u32[]', space=smem, size = 0x4, offset = 0x4, fixed_abs, tag = 'smem constant byte address 0x4 - core index']
  #allocation1 [shape = 'u32[72,128]{1,0:T(1,128)}', space=vmem, size = 0x9000, scoped, tag = 'internal scratch']
  #allocation2 [shape = 'f32[8,8,128]{2,1,0:T(8,128)}', space=vmem, size = 0x8000, scoped, tag = 'scratch operand']
  #allocation3 [shape = 'f32[8,32]{1,0:T(8,128)}', space=vmem, size = 0x1000, scoped, tag = 'scratch operand']
  #allocation4 [shape = 'f32[8,32]{1,0:T(8,128)}', space=vmem, size = 0x1000, scoped, tag = 'scratch operand']
  %s0 = inlined_call_operand.vmem [shape: f32[8,8,32], index: 0, kind: input, shape index: {}]
  %s1 = inlined_call_operand.vmem [shape: f32[32,128], index: 1, kind: input, shape index: {}]
  %s2 = inlined_call_operand.vmem [shape: f32[1,128], index: 2, kind: input, shape index: {}]
  %s3 = inlined_call_operand.vmem [shape: f32[32,128], index: 3, kind: input, shape index: {}]
  %s4 = inlined_call_operand.hbm [shape: f32[32,128], index: 4, kind: input, shape index: {}]
  %s5 = inlined_call_operand.hbm [shape: f32[1,128], index: 5, kind: input, shape index: {}]
  %s6 = inlined_call_operand.vmem [shape: f32[8,128], index: 6, kind: output, shape index: {}]
  %s7 = sld [smem:[#allocation0]]
  $region42: #{sentiment_lstm_forward.3} parent=0
    _
  %s9 = ssub.s32 1, %s7
  %s10 = scalar_select 0, %s9, %s7
  $region1: #{sentiment_lstm_forward.3} parent=0
    #allocation5 [shape = 'u8[16384]{0}', space=vmem, size = 0x4000, scoped, tag = 'input window, operand 4, single buffered']
    #allocation6 [shape = 's32[1]{0}', space=sflag, size = 0x4, scoped, tag = 'scoped memory for sentiment_lstm_forward.3']
    #allocation7 [shape = 'u8[512]{0}', space=vmem, size = 0x400, scoped, tag = 'input window, operand 5, single buffered']
    #allocation8 [shape = 's32[1]{0}', space=sflag, size = 0x4, scoped, tag = 'scoped memory for sentiment_lstm_forward.3']
    %11 = vsyncpa [#allocation6], 0
    %12 = vsyncpa [#allocation8], 0
    // Predicated region
    $region2: #{sentiment_lstm_forward.3} parent=1 // pred_check
      _
    $region3: #{sentiment_lstm_forward.3} parent=1 // pred_check_branch
      %14 = sbr.rel (0) target = $region5
    $region4: #{sentiment_lstm_forward.3} parent=1 // pred_region
      _
    $region5: #{sentiment_lstm_forward.3} parent=1 // pred_fallthru
      _
    // Predicated region
    $region6: #{sentiment_lstm_forward.3} parent=1 // pred_check
      _
    $region7: #{sentiment_lstm_forward.3} parent=1 // pred_check_branch
      %16 = sbr.rel (0) target = $region9
    $region8: #{sentiment_lstm_forward.3} parent=1 // pred_region
      _
    $region9: #{sentiment_lstm_forward.3} parent=1 // pred_fallthru
      _
    // Predicated region
    $region10: #{sentiment_lstm_forward.3} parent=1 // pred_check
      _
    $region11: #{sentiment_lstm_forward.3} parent=1 // pred_check_branch
      %18 = sbr.rel (0) target = $region13
    $region12: #{sentiment_lstm_forward.3} parent=1 // pred_region
      _
    $region13: #{sentiment_lstm_forward.3} parent=1 // pred_fallthru
      _
    // Predicated region
    $region14: #{sentiment_lstm_forward.3} parent=1 // pred_check
      _
    $region15: #{sentiment_lstm_forward.3} parent=1 // pred_check_branch
      %20 = sbr.rel (0) target = $region17
    $region16: #{sentiment_lstm_forward.3} parent=1 // pred_region
      _
    $region17: #{sentiment_lstm_forward.3} parent=1 // pred_fallthru
      _
    // Predicated region
    $region18: #{sentiment_lstm_forward.3} parent=1 // pred_check
      _
    $region19: #{sentiment_lstm_forward.3} parent=1 // pred_check_branch
      %22 = sbr.rel (0) target = $region21
    $region20: #{sentiment_lstm_forward.3} parent=1 // pred_region
      %24 = vsyncadd [#allocation6], 0
      %s25 = sshll.u32 %s4, 4
      %s26 = int_to_ptr.hbm [resolvable:$true] %s25
      %s27 = sshll.u32 [#allocation5], 4
      %s28 = int_to_ptr.vmem [resolvable:$true] %s27
      %33 = dma.hbm_to_vmem [thread:$0]  %s26, 512, %s28, [#allocation6], 128, 128, 8
    $region21: #{sentiment_lstm_forward.3} parent=1 // pred_fallthru
      _
    // Predicated region
    $region22: #{sentiment_lstm_forward.3} parent=1 // pred_check
      _
    $region23: #{sentiment_lstm_forward.3} parent=1 // pred_check_branch
      %35 = sbr.rel (0) target = $region25
    $region24: #{sentiment_lstm_forward.3} parent=1 // pred_region
      %37 = vsyncadd [#allocation8], 0
      %s39 = sshll.u32 %s5, 4
      %s40 = int_to_ptr.hbm [resolvable:$true] %s39
      %s41 = sshll.u32 [#allocation7], 4
      %s42 = int_to_ptr.vmem [resolvable:$true] %s41
      %44 = dma.hbm_to_vmem [thread:$0]  %s40, 16, %s42, [#allocation8]
    $region25: #{sentiment_lstm_forward.3} parent=1 // pred_fallthru
      _
    // Predicated region
    $region26: #{sentiment_lstm_forward.3} parent=1 // pred_check
      _
    $region27: #{sentiment_lstm_forward.3} parent=1 // pred_check_branch
      %46 = sbr.rel (0) target = $region29
    $region28: #{sentiment_lstm_forward.3} parent=1 // pred_region
      %48 = dma.done [#allocation6], 512
    $region29: #{sentiment_lstm_forward.3} parent=1 // pred_fallthru
      _
    // Predicated region
    $region30: #{sentiment_lstm_forward.3} parent=1 // pred_check
      _
    $region31: #{sentiment_lstm_forward.3} parent=1 // pred_check_branch
      %50 = sbr.rel (0) target = $region33
    $region32: #{sentiment_lstm_forward.3} parent=1 // pred_region
      %52 = dma.done [#allocation8], 16
    $region33: #{sentiment_lstm_forward.3} parent=1 // pred_fallthru
      _
    %v53 = vld [vmem:[%s0] sm:$0xff]
    %v54 = vld [vmem:[%s0 + $0x8] sm:$0xff]
    %v55 = vld [vmem:[%s0 + $0x10] sm:$0xff]
    %v56 = vld [vmem:[%s0 + $0x18] sm:$0xff]
    %v57 = vld [vmem:[%s0 + $0x20] sm:$0xff]
    %v58 = vld [vmem:[%s0 + $0x28] sm:$0xff]
    %v59 = vld [vmem:[%s0 + $0x30] sm:$0xff]
    %v60 = vld [vmem:[%s0 + $0x38] sm:$0xff]
    %v61 = vld [vmem:[%s1] sm:$0xff]
    %v62 = vld [vmem:[%s1 + $0x8] sm:$0xff]
    %v63 = vld [vmem:[%s1 + $0x10] sm:$0xff]
    %v64 = vld [vmem:[%s1 + $0x18] sm:$0xff]
    %v65 = vld [vmem:[%s2] sm:$0x1]
    %v67 = vperm.slane %v65, 0
    %vm69 = vcmask 261120
    %v71 = vsel %vm69, %v53, 0
    %v74 = vsel %vm69, %v54, 0
    %v77 = vsel %vm69, %v55, 0
    %v80 = vsel %vm69, %v56, 0
    %v83 = vsel %vm69, %v57, 0
    %v86 = vsel %vm69, %v58, 0
    %v89 = vsel %vm69, %v59, 0
    %v92 = vsel %vm69, %v60, 0
    %94 = vmatpush.msra.mxu0 0.0
    %95 = vmatpush.msra.mxu0 0.0
    %96 = vmatpush.msra.mxu0 0.0
    %97 = vmatpush.msra.mxu0 0.0
    %98 = vmatpush.msra.mxu0 0.0
    %99 = vmatpush.msra.mxu0 0.0
    %100 = vmatpush.msra.mxu0 0.0
    %101 = vmatpush.msra.mxu0 0.0
    %102 = vmatpush.msra.mxu0 0.0
    %103 = vmatpush.msra.mxu0 0.0
    %104 = vmatpush.msra.mxu0 0.0
    %105 = vmatpush.msra.mxu0 0.0
    %106 = vmatpush.msra.mxu0 %v64
    %107 = vmatpush.msra.mxu0 %v63
    %108 = vmatpush.msra.mxu0 %v62
    %109 = vmatpush.msra.mxu0 %v61
    %110 = vmatmul.f32.gmra.mxu0 %v71
    %v111 = vpop.f32.mrf.mxu0
    %v112 = vadd.f32 %v67, %v111
    %113 = vmatmul.f32.gmra.mxu0 %v74
    %v114 = vpop.f32.mrf.mxu0
    %v115 = vadd.f32 %v67, %v114
    %116 = vmatmul.f32.gmra.mxu0 %v77
    %v117 = vpop.f32.mrf.mxu0
    %v118 = vadd.f32 %v67, %v117
    %119 = vmatmul.f32.gmra.mxu0 %v80
    %v120 = vpop.f32.mrf.mxu0
    %v121 = vadd.f32 %v67, %v120
    %122 = vmatmul.f32.gmra.mxu0 %v83
    %v123 = vpop.f32.mrf.mxu0
    %v124 = vadd.f32 %v67, %v123
    %125 = vmatmul.f32.gmra.mxu0 %v86
    %v126 = vpop.f32.mrf.mxu0
    %v127 = vadd.f32 %v67, %v126
    %128 = vmatmul.f32.gmra.mxu0 %v89
    %v129 = vpop.f32.mrf.mxu0
    %v130 = vadd.f32 %v67, %v129
    %131 = vmatmul.f32.gmra.mxu0 %v92
    %v132 = vpop.f32.mrf.mxu0
    %v133 = vadd.f32 %v67, %v132
    %134 = vdwg.mxu0
    %135 = vst [vmem:[#allocation2] sm:$0xff] %v112
    %136 = vst [vmem:[#allocation2 + $0x8] sm:$0xff] %v115
    %137 = vst [vmem:[#allocation2 + $0x10] sm:$0xff] %v118
    %138 = vst [vmem:[#allocation2 + $0x18] sm:$0xff] %v121
    %139 = vst [vmem:[#allocation2 + $0x20] sm:$0xff] %v124
    %140 = vst [vmem:[#allocation2 + $0x28] sm:$0xff] %v127
    %141 = vst [vmem:[#allocation2 + $0x30] sm:$0xff] %v130
    %142 = vst [vmem:[#allocation2 + $0x38] sm:$0xff] %v133
    %143 = vst.msk [vmem:[#allocation3] sm:$0xff] %vm69, 0.0
    %144 = vst.msk [vmem:[#allocation4] sm:$0xff] %vm69, 0.0
    %v145 = vld [vmem:[%s3] sm:$0xff]
    %v146 = vld [vmem:[%s3 + $0x8] sm:$0xff]
    %v147 = vld [vmem:[%s3 + $0x10] sm:$0xff]
    %v148 = vld [vmem:[%s3 + $0x18] sm:$0xff]
    %v149 = vld [vmem:[#allocation3] sm:$0xff]
    %v150 = vld [vmem:[#allocation4] sm:$0xff]
    %v151 = vld [vmem:[#allocation2] sm:$0xff]
    %v153 = vsel %vm69, %v149, 0
    %155 = vmatpush.msra.mxu0 0.0
    %156 = vmatpush.msra.mxu0 0.0
    %157 = vmatpush.msra.mxu0 0.0
    %158 = vmatpush.msra.mxu0 0.0
    %159 = vmatpush.msra.mxu0 0.0
    %160 = vmatpush.msra.mxu0 0.0
    %161 = vmatpush.msra.mxu0 0.0
    %162 = vmatpush.msra.mxu0 0.0
    %163 = vmatpush.msra.mxu0 0.0
    %164 = vmatpush.msra.mxu0 0.0
    %165 = vmatpush.msra.mxu0 0.0
    %166 = vmatpush.msra.mxu0 0.0
    %167 = vmatpush.msra.mxu0 %v148
    %168 = vmatpush.msra.mxu0 %v147
    %169 = vmatpush.msra.mxu0 %v146
    %170 = vmatpush.msra.mxu0 %v145
    %171 = vmatmul.f32.gmra.mxu0 %v153
    %v172 = vpop.f32.mrf.mxu0
    %v173 = vadd.f32 0.0, %v172
    %174 = vdwg.mxu0
    %v175 = vadd.f32 %v151, %v173
    %v176 = vxor.u32 %v175, 2147483648
    %v177 = vmul.f32 %v176, 1.442695
    %v178 = vpow.pop %v177
    %v179 = vadd.f32 %v178, 1.0
    %v180 = vrcp.pop %v179
    %v181 = vmul.f32 %v179, %v180
    %v182 = vsub.f32 1.0, %v181
    %v183 = vmul.f32 %v180, %v182
    %v184 = vadd.f32 %v180, %v183
    %vm185 = vweird.f32 %v179
    %vm186 = vweird.f32 %v180
    %vm187 = vmor %vm185, %vm186
    %v188 = vsel %vm187, %v180, %v184
    %v189 = vand.u32 2147483647, %v179
    %vm190 = vcmp.eq.f32.partialorder %v189, 8.507059e+37
    %v191 = vand.u32 %v179, 2147483648
    %v192 = vor.u32 1.1754944e-38, %v191
    %v193 = vsel %vm190, %v192, %v188
    %v194 = vmul.f32 1.0, %v193
    %v195 = vtanh.pop %v175
    %197 = vrot.lane.b32.xlu0 %v150, 32
    %v198 = vpop.permute.xlu0 %197
    %v200 = vmul.f32 %v194, %v198
    %202 = vrot.lane.b32.xlu0 %v195, 32
    %v203 = vpop.permute.xlu0 %202
    %v205 = vmul.f32 %v194, %v203
    %207 = vrot.lane.b32.xlu0 %v205, 32
    %v208 = vpop.permute.xlu0 %207
    %v210 = vadd.f32 %v200, %v208
    %v211 = vtanh.pop %v210
    %213 = vrot.lane.b32.xlu0 %v211, 32
    %v214 = vpop.permute.xlu0 %213
    %v216 = vmul.f32 %v194, %v214
    %218 = vrot.lane.b32.xlu0 %v216, 64
    %v219 = vpop.permute.xlu0 %218
    %221 = vst.msk [vmem:[#allocation3] sm:$0xff] %vm69, %v219
    %223 = vrot.lane.b32.xlu0 %v210, 96
    %v224 = vpop.permute.xlu0 %223
    %226 = vst.msk [vmem:[#allocation4] sm:$0xff] %vm69, %v224
    %v227 = vld [vmem:[#allocation3] sm:$0xff]
    %v228 = vld [vmem:[#allocation4] sm:$0xff]
    %s229 = scalar_lea.vmem [#allocation2], 8
    %v230 = vld [vmem:[%s229] sm:$0xff]
    %v232 = vsel %vm69, %v227, 0
    %234 = vmatpush.msra.mxu0 0.0
    %235 = vmatpush.msra.mxu0 0.0
    %236 = vmatpush.msra.mxu0 0.0
    %237 = vmatpush.msra.mxu0 0.0
    %238 = vmatpush.msra.mxu0 0.0
    %239 = vmatpush.msra.mxu0 0.0
    %240 = vmatpush.msra.mxu0 0.0
    %241 = vmatpush.msra.mxu0 0.0
    %242 = vmatpush.msra.mxu0 0.0
    %243 = vmatpush.msra.mxu0 0.0
    %244 = vmatpush.msra.mxu0 0.0
    %245 = vmatpush.msra.mxu0 0.0
    %246 = vmatpush.msra.mxu0 %v148
    %247 = vmatpush.msra.mxu0 %v147
    %248 = vmatpush.msra.mxu0 %v146
    %249 = vmatpush.msra.mxu0 %v145
    %250 = vmatmul.f32.gmra.mxu0 %v232
    %v251 = vpop.f32.mrf.mxu0
    %v252 = vadd.f32 0.0, %v251
    %253 = vdwg.mxu0
    %v254 = vadd.f32 %v230, %v252
    %v255 = vxor.u32 %v254, 2147483648
    %v256 = vmul.f32 %v255, 1.442695
    %v257 = vpow.pop %v256
    %v258 = vadd.f32 %v257, 1.0
    %v259 = vrcp.pop %v258
    %v260 = vmul.f32 %v258, %v259
    %v261 = vsub.f32 1.0, %v260
    %v262 = vmul.f32 %v259, %v261
    %v263 = vadd.f32 %v259, %v262
    %vm264 = vweird.f32 %v258
    %vm265 = vweird.f32 %v259
    %vm266 = vmor %vm264, %vm265
    %v267 = vsel %vm266, %v259, %v263
    %v268 = vand.u32 2147483647, %v258
    %vm269 = vcmp.eq.f32.partialorder %v268, 8.507059e+37
    %v270 = vand.u32 %v258, 2147483648
    %v271 = vor.u32 1.1754944e-38, %v270
    %v272 = vsel %vm269, %v271, %v267
    %v273 = vmul.f32 1.0, %v272
    %v274 = vtanh.pop %v254
    %276 = vrot.lane.b32.xlu0 %v228, 32
    %v277 = vpop.permute.xlu0 %276
    %v279 = vmul.f32 %v273, %v277
    %281 = vrot.lane.b32.xlu0 %v274, 32
    %v282 = vpop.permute.xlu0 %281
    %v284 = vmul.f32 %v273, %v282
    %286 = vrot.lane.b32.xlu0 %v284, 32
    %v287 = vpop.permute.xlu0 %286
    %v289 = vadd.f32 %v279, %v287
    %v290 = vtanh.pop %v289
    %292 = vrot.lane.b32.xlu0 %v290, 32
    %v293 = vpop.permute.xlu0 %292
    %v295 = vmul.f32 %v273, %v293
    %297 = vrot.lane.b32.xlu0 %v295, 64
    %v298 = vpop.permute.xlu0 %297
    %300 = vst.msk [vmem:[#allocation3] sm:$0xff] %vm69, %v298
    %302 = vrot.lane.b32.xlu0 %v289, 96
    %v303 = vpop.permute.xlu0 %302
    %305 = vst.msk [vmem:[#allocation4] sm:$0xff] %vm69, %v303
    %v306 = vld [vmem:[#allocation3] sm:$0xff]
    %v307 = vld [vmem:[#allocation4] sm:$0xff]
    %s308 = scalar_lea.vmem [#allocation2], 16
    %v309 = vld [vmem:[%s308] sm:$0xff]
    %v311 = vsel %vm69, %v306, 0
    %313 = vmatpush.msra.mxu0 0.0
    %314 = vmatpush.msra.mxu0 0.0
    %315 = vmatpush.msra.mxu0 0.0
    %316 = vmatpush.msra.mxu0 0.0
    %317 = vmatpush.msra.mxu0 0.0
    %318 = vmatpush.msra.mxu0 0.0
    %319 = vmatpush.msra.mxu0 0.0
    %320 = vmatpush.msra.mxu0 0.0
    %321 = vmatpush.msra.mxu0 0.0
    %322 = vmatpush.msra.mxu0 0.0
    %323 = vmatpush.msra.mxu0 0.0
    %324 = vmatpush.msra.mxu0 0.0
    %325 = vmatpush.msra.mxu0 %v148
    %326 = vmatpush.msra.mxu0 %v147
    %327 = vmatpush.msra.mxu0 %v146
    %328 = vmatpush.msra.mxu0 %v145
    %329 = vmatmul.f32.gmra.mxu0 %v311
    %v330 = vpop.f32.mrf.mxu0
    %v331 = vadd.f32 0.0, %v330
    %332 = vdwg.mxu0
    %v333 = vadd.f32 %v309, %v331
    %v334 = vxor.u32 %v333, 2147483648
    %v335 = vmul.f32 %v334, 1.442695
    %v336 = vpow.pop %v335
    %v337 = vadd.f32 %v336, 1.0
    %v338 = vrcp.pop %v337
    %v339 = vmul.f32 %v337, %v338
    %v340 = vsub.f32 1.0, %v339
    %v341 = vmul.f32 %v338, %v340
    %v342 = vadd.f32 %v338, %v341
    %vm343 = vweird.f32 %v337
    %vm344 = vweird.f32 %v338
    %vm345 = vmor %vm343, %vm344
    %v346 = vsel %vm345, %v338, %v342
    %v347 = vand.u32 2147483647, %v337
    %vm348 = vcmp.eq.f32.partialorder %v347, 8.507059e+37
    %v349 = vand.u32 %v337, 2147483648
    %v350 = vor.u32 1.1754944e-38, %v349
    %v351 = vsel %vm348, %v350, %v346
    %v352 = vmul.f32 1.0, %v351
    %v353 = vtanh.pop %v333
    %355 = vrot.lane.b32.xlu0 %v307, 32
    %v356 = vpop.permute.xlu0 %355
    %v358 = vmul.f32 %v352, %v356
    %360 = vrot.lane.b32.xlu0 %v353, 32
    %v361 = vpop.permute.xlu0 %360
    %v363 = vmul.f32 %v352, %v361
    %365 = vrot.lane.b32.xlu0 %v363, 32
    %v366 = vpop.permute.xlu0 %365
    %v368 = vadd.f32 %v358, %v366
    %v369 = vtanh.pop %v368
    %371 = vrot.lane.b32.xlu0 %v369, 32
    %v372 = vpop.permute.xlu0 %371
    %v374 = vmul.f32 %v352, %v372
    %376 = vrot.lane.b32.xlu0 %v374, 64
    %v377 = vpop.permute.xlu0 %376
    %379 = vst.msk [vmem:[#allocation3] sm:$0xff] %vm69, %v377
    %381 = vrot.lane.b32.xlu0 %v368, 96
    %v382 = vpop.permute.xlu0 %381
    %384 = vst.msk [vmem:[#allocation4] sm:$0xff] %vm69, %v382
    %v385 = vld [vmem:[#allocation3] sm:$0xff]
    %v386 = vld [vmem:[#allocation4] sm:$0xff]
    %s387 = scalar_lea.vmem [#allocation2], 24
    %v388 = vld [vmem:[%s387] sm:$0xff]
    %v390 = vsel %vm69, %v385, 0
    %392 = vmatpush.msra.mxu0 0.0
    %393 = vmatpush.msra.mxu0 0.0
    %394 = vmatpush.msra.mxu0 0.0
    %395 = vmatpush.msra.mxu0 0.0
    %396 = vmatpush.msra.mxu0 0.0
    %397 = vmatpush.msra.mxu0 0.0
    %398 = vmatpush.msra.mxu0 0.0
    %399 = vmatpush.msra.mxu0 0.0
    %400 = vmatpush.msra.mxu0 0.0
    %401 = vmatpush.msra.mxu0 0.0
    %402 = vmatpush.msra.mxu0 0.0
    %403 = vmatpush.msra.mxu0 0.0
    %404 = vmatpush.msra.mxu0 %v148
    %405 = vmatpush.msra.mxu0 %v147
    %406 = vmatpush.msra.mxu0 %v146
    %407 = vmatpush.msra.mxu0 %v145
    %408 = vmatmul.f32.gmra.mxu0 %v390
    %v409 = vpop.f32.mrf.mxu0
    %v410 = vadd.f32 0.0, %v409
    %411 = vdwg.mxu0
    %v412 = vadd.f32 %v388, %v410
    %v413 = vxor.u32 %v412, 2147483648
    %v414 = vmul.f32 %v413, 1.442695
    %v415 = vpow.pop %v414
    %v416 = vadd.f32 %v415, 1.0
    %v417 = vrcp.pop %v416
    %v418 = vmul.f32 %v416, %v417
    %v419 = vsub.f32 1.0, %v418
    %v420 = vmul.f32 %v417, %v419
    %v421 = vadd.f32 %v417, %v420
    %vm422 = vweird.f32 %v416
    %vm423 = vweird.f32 %v417
    %vm424 = vmor %vm422, %vm423
    %v425 = vsel %vm424, %v417, %v421
    %v426 = vand.u32 2147483647, %v416
    %vm427 = vcmp.eq.f32.partialorder %v426, 8.507059e+37
    %v428 = vand.u32 %v416, 2147483648
    %v429 = vor.u32 1.1754944e-38, %v428
    %v430 = vsel %vm427, %v429, %v425
    %v431 = vmul.f32 1.0, %v430
    %v432 = vtanh.pop %v412
    %434 = vrot.lane.b32.xlu0 %v386, 32
    %v435 = vpop.permute.xlu0 %434
    %v437 = vmul.f32 %v431, %v435
    %439 = vrot.lane.b32.xlu0 %v432, 32
    %v440 = vpop.permute.xlu0 %439
    %v442 = vmul.f32 %v431, %v440
    %444 = vrot.lane.b32.xlu0 %v442, 32
    %v445 = vpop.permute.xlu0 %444
    %v447 = vadd.f32 %v437, %v445
    %v448 = vtanh.pop %v447
    %450 = vrot.lane.b32.xlu0 %v448, 32
    %v451 = vpop.permute.xlu0 %450
    %v453 = vmul.f32 %v431, %v451
    %455 = vrot.lane.b32.xlu0 %v453, 64
    %v456 = vpop.permute.xlu0 %455
    %458 = vst.msk [vmem:[#allocation3] sm:$0xff] %vm69, %v456
    %460 = vrot.lane.b32.xlu0 %v447, 96
    %v461 = vpop.permute.xlu0 %460
    %463 = vst.msk [vmem:[#allocation4] sm:$0xff] %vm69, %v461
    %v464 = vld [vmem:[#allocation3] sm:$0xff]
    %v465 = vld [vmem:[#allocation4] sm:$0xff]
    %s466 = scalar_lea.vmem [#allocation2], 32
    %v467 = vld [vmem:[%s466] sm:$0xff]
    %v469 = vsel %vm69, %v464, 0
    %471 = vmatpush.msra.mxu0 0.0
    %472 = vmatpush.msra.mxu0 0.0
    %473 = vmatpush.msra.mxu0 0.0
    %474 = vmatpush.msra.mxu0 0.0
    %475 = vmatpush.msra.mxu0 0.0
    %476 = vmatpush.msra.mxu0 0.0
    %477 = vmatpush.msra.mxu0 0.0
    %478 = vmatpush.msra.mxu0 0.0
    %479 = vmatpush.msra.mxu0 0.0
    %480 = vmatpush.msra.mxu0 0.0
    %481 = vmatpush.msra.mxu0 0.0
    %482 = vmatpush.msra.mxu0 0.0
    %483 = vmatpush.msra.mxu0 %v148
    %484 = vmatpush.msra.mxu0 %v147
    %485 = vmatpush.msra.mxu0 %v146
    %486 = vmatpush.msra.mxu0 %v145
    %487 = vmatmul.f32.gmra.mxu0 %v469
    %v488 = vpop.f32.mrf.mxu0
    %v489 = vadd.f32 0.0, %v488
    %490 = vdwg.mxu0
    %v491 = vadd.f32 %v467, %v489
    %v492 = vxor.u32 %v491, 2147483648
    %v493 = vmul.f32 %v492, 1.442695
    %v494 = vpow.pop %v493
    %v495 = vadd.f32 %v494, 1.0
    %v496 = vrcp.pop %v495
    %v497 = vmul.f32 %v495, %v496
    %v498 = vsub.f32 1.0, %v497
    %v499 = vmul.f32 %v496, %v498
    %v500 = vadd.f32 %v496, %v499
    %vm501 = vweird.f32 %v495
    %vm502 = vweird.f32 %v496
    %vm503 = vmor %vm501, %vm502
    %v504 = vsel %vm503, %v496, %v500
    %v505 = vand.u32 2147483647, %v495
    %vm506 = vcmp.eq.f32.partialorder %v505, 8.507059e+37
    %v507 = vand.u32 %v495, 2147483648
    %v508 = vor.u32 1.1754944e-38, %v507
    %v509 = vsel %vm506, %v508, %v504
    %v510 = vmul.f32 1.0, %v509
    %v511 = vtanh.pop %v491
    %513 = vrot.lane.b32.xlu0 %v465, 32
    %v514 = vpop.permute.xlu0 %513
    %v516 = vmul.f32 %v510, %v514
    %518 = vrot.lane.b32.xlu0 %v511, 32
    %v519 = vpop.permute.xlu0 %518
    %v521 = vmul.f32 %v510, %v519
    %523 = vrot.lane.b32.xlu0 %v521, 32
    %v524 = vpop.permute.xlu0 %523
    %v526 = vadd.f32 %v516, %v524
    %v527 = vtanh.pop %v526
    %529 = vrot.lane.b32.xlu0 %v527, 32
    %v530 = vpop.permute.xlu0 %529
    %v532 = vmul.f32 %v510, %v530
    %534 = vrot.lane.b32.xlu0 %v532, 64
    %v535 = vpop.permute.xlu0 %534
    %537 = vst.msk [vmem:[#allocation3] sm:$0xff] %vm69, %v535
    %539 = vrot.lane.b32.xlu0 %v526, 96
    %v540 = vpop.permute.xlu0 %539
    %542 = vst.msk [vmem:[#allocation4] sm:$0xff] %vm69, %v540
    %v543 = vld [vmem:[#allocation3] sm:$0xff]
    %v544 = vld [vmem:[#allocation4] sm:$0xff]
    %s545 = scalar_lea.vmem [#allocation2], 40
    %v546 = vld [vmem:[%s545] sm:$0xff]
    %v548 = vsel %vm69, %v543, 0
    %550 = vmatpush.msra.mxu0 0.0
    %551 = vmatpush.msra.mxu0 0.0
    %552 = vmatpush.msra.mxu0 0.0
    %553 = vmatpush.msra.mxu0 0.0
    %554 = vmatpush.msra.mxu0 0.0
    %555 = vmatpush.msra.mxu0 0.0
    %556 = vmatpush.msra.mxu0 0.0
    %557 = vmatpush.msra.mxu0 0.0
    %558 = vmatpush.msra.mxu0 0.0
    %559 = vmatpush.msra.mxu0 0.0
    %560 = vmatpush.msra.mxu0 0.0
    %561 = vmatpush.msra.mxu0 0.0
    %562 = vmatpush.msra.mxu0 %v148
    %563 = vmatpush.msra.mxu0 %v147
    %564 = vmatpush.msra.mxu0 %v146
    %565 = vmatpush.msra.mxu0 %v145
    %566 = vmatmul.f32.gmra.mxu0 %v548
    %v567 = vpop.f32.mrf.mxu0
    %v568 = vadd.f32 0.0, %v567
    %569 = vdwg.mxu0
    %v570 = vadd.f32 %v546, %v568
    %v571 = vxor.u32 %v570, 2147483648
    %v572 = vmul.f32 %v571, 1.442695
    %v573 = vpow.pop %v572
    %v574 = vadd.f32 %v573, 1.0
    %v575 = vrcp.pop %v574
    %v576 = vmul.f32 %v574, %v575
    %v577 = vsub.f32 1.0, %v576
    %v578 = vmul.f32 %v575, %v577
    %v579 = vadd.f32 %v575, %v578
    %vm580 = vweird.f32 %v574
    %vm581 = vweird.f32 %v575
    %vm582 = vmor %vm580, %vm581
    %v583 = vsel %vm582, %v575, %v579
    %v584 = vand.u32 2147483647, %v574
    %vm585 = vcmp.eq.f32.partialorder %v584, 8.507059e+37
    %v586 = vand.u32 %v574, 2147483648
    %v587 = vor.u32 1.1754944e-38, %v586
    %v588 = vsel %vm585, %v587, %v583
    %v589 = vmul.f32 1.0, %v588
    %v590 = vtanh.pop %v570
    %592 = vrot.lane.b32.xlu0 %v544, 32
    %v593 = vpop.permute.xlu0 %592
    %v595 = vmul.f32 %v589, %v593
    %597 = vrot.lane.b32.xlu0 %v590, 32
    %v598 = vpop.permute.xlu0 %597
    %v600 = vmul.f32 %v589, %v598
    %602 = vrot.lane.b32.xlu0 %v600, 32
    %v603 = vpop.permute.xlu0 %602
    %v605 = vadd.f32 %v595, %v603
    %v606 = vtanh.pop %v605
    %608 = vrot.lane.b32.xlu0 %v606, 32
    %v609 = vpop.permute.xlu0 %608
    %v611 = vmul.f32 %v589, %v609
    %613 = vrot.lane.b32.xlu0 %v611, 64
    %v614 = vpop.permute.xlu0 %613
    %616 = vst.msk [vmem:[#allocation3] sm:$0xff] %vm69, %v614
    %618 = vrot.lane.b32.xlu0 %v605, 96
    %v619 = vpop.permute.xlu0 %618
    %621 = vst.msk [vmem:[#allocation4] sm:$0xff] %vm69, %v619
    %v622 = vld [vmem:[#allocation3] sm:$0xff]
    %v623 = vld [vmem:[#allocation4] sm:$0xff]
    %s624 = scalar_lea.vmem [#allocation2], 48
    %v625 = vld [vmem:[%s624] sm:$0xff]
    %v627 = vsel %vm69, %v622, 0
    %629 = vmatpush.msra.mxu0 0.0
    %630 = vmatpush.msra.mxu0 0.0
    %631 = vmatpush.msra.mxu0 0.0
    %632 = vmatpush.msra.mxu0 0.0
    %633 = vmatpush.msra.mxu0 0.0
    %634 = vmatpush.msra.mxu0 0.0
    %635 = vmatpush.msra.mxu0 0.0
    %636 = vmatpush.msra.mxu0 0.0
    %637 = vmatpush.msra.mxu0 0.0
    %638 = vmatpush.msra.mxu0 0.0
    %639 = vmatpush.msra.mxu0 0.0
    %640 = vmatpush.msra.mxu0 0.0
    %641 = vmatpush.msra.mxu0 %v148
    %642 = vmatpush.msra.mxu0 %v147
    %643 = vmatpush.msra.mxu0 %v146
    %644 = vmatpush.msra.mxu0 %v145
    %645 = vmatmul.f32.gmra.mxu0 %v627
    %v646 = vpop.f32.mrf.mxu0
    %v647 = vadd.f32 0.0, %v646
    %648 = vdwg.mxu0
    %v649 = vadd.f32 %v625, %v647
    %v650 = vxor.u32 %v649, 2147483648
    %v651 = vmul.f32 %v650, 1.442695
    %v652 = vpow.pop %v651
    %v653 = vadd.f32 %v652, 1.0
    %v654 = vrcp.pop %v653
    %v655 = vmul.f32 %v653, %v654
    %v656 = vsub.f32 1.0, %v655
    %v657 = vmul.f32 %v654, %v656
    %v658 = vadd.f32 %v654, %v657
    %vm659 = vweird.f32 %v653
    %vm660 = vweird.f32 %v654
    %vm661 = vmor %vm659, %vm660
    %v662 = vsel %vm661, %v654, %v658
    %v663 = vand.u32 2147483647, %v653
    %vm664 = vcmp.eq.f32.partialorder %v663, 8.507059e+37
    %v665 = vand.u32 %v653, 2147483648
    %v666 = vor.u32 1.1754944e-38, %v665
    %v667 = vsel %vm664, %v666, %v662
    %v668 = vmul.f32 1.0, %v667
    %v669 = vtanh.pop %v649
    %671 = vrot.lane.b32.xlu0 %v623, 32
    %v672 = vpop.permute.xlu0 %671
    %v674 = vmul.f32 %v668, %v672
    %676 = vrot.lane.b32.xlu0 %v669, 32
    %v677 = vpop.permute.xlu0 %676
    %v679 = vmul.f32 %v668, %v677
    %681 = vrot.lane.b32.xlu0 %v679, 32
    %v682 = vpop.permute.xlu0 %681
    %v684 = vadd.f32 %v674, %v682
    %v685 = vtanh.pop %v684
    %687 = vrot.lane.b32.xlu0 %v685, 32
    %v688 = vpop.permute.xlu0 %687
    %v690 = vmul.f32 %v668, %v688
    %692 = vrot.lane.b32.xlu0 %v690, 64
    %v693 = vpop.permute.xlu0 %692
    %695 = vst.msk [vmem:[#allocation3] sm:$0xff] %vm69, %v693
    %697 = vrot.lane.b32.xlu0 %v684, 96
    %v698 = vpop.permute.xlu0 %697
    %700 = vst.msk [vmem:[#allocation4] sm:$0xff] %vm69, %v698
    %v701 = vld [vmem:[#allocation3] sm:$0xff]
    %v702 = vld [vmem:[#allocation4] sm:$0xff]
    %s703 = scalar_lea.vmem [#allocation2], 56
    %v704 = vld [vmem:[%s703] sm:$0xff]
    %v706 = vsel %vm69, %v701, 0
    %708 = vmatpush.msra.mxu0 0.0
    %709 = vmatpush.msra.mxu0 0.0
    %710 = vmatpush.msra.mxu0 0.0
    %711 = vmatpush.msra.mxu0 0.0
    %712 = vmatpush.msra.mxu0 0.0
    %713 = vmatpush.msra.mxu0 0.0
    %714 = vmatpush.msra.mxu0 0.0
    %715 = vmatpush.msra.mxu0 0.0
    %716 = vmatpush.msra.mxu0 0.0
    %717 = vmatpush.msra.mxu0 0.0
    %718 = vmatpush.msra.mxu0 0.0
    %719 = vmatpush.msra.mxu0 0.0
    %720 = vmatpush.msra.mxu0 %v148
    %721 = vmatpush.msra.mxu0 %v147
    %722 = vmatpush.msra.mxu0 %v146
    %723 = vmatpush.msra.mxu0 %v145
    %724 = vmatmul.f32.gmra.mxu0 %v706
    %v725 = vpop.f32.mrf.mxu0
    %v726 = vadd.f32 0.0, %v725
    %727 = vdwg.mxu0
    %v728 = vadd.f32 %v704, %v726
    %v729 = vxor.u32 %v728, 2147483648
    %v730 = vmul.f32 %v729, 1.442695
    %v731 = vpow.pop %v730
    %v732 = vadd.f32 %v731, 1.0
    %v733 = vrcp.pop %v732
    %v734 = vmul.f32 %v732, %v733
    %v735 = vsub.f32 1.0, %v734
    %v736 = vmul.f32 %v733, %v735
    %v737 = vadd.f32 %v733, %v736
    %vm738 = vweird.f32 %v732
    %vm739 = vweird.f32 %v733
    %vm740 = vmor %vm738, %vm739
    %v741 = vsel %vm740, %v733, %v737
    %v742 = vand.u32 2147483647, %v732
    %vm743 = vcmp.eq.f32.partialorder %v742, 8.507059e+37
    %v744 = vand.u32 %v732, 2147483648
    %v745 = vor.u32 1.1754944e-38, %v744
    %v746 = vsel %vm743, %v745, %v741
    %v747 = vmul.f32 1.0, %v746
    %v748 = vtanh.pop %v728
    %750 = vrot.lane.b32.xlu0 %v702, 32
    %v751 = vpop.permute.xlu0 %750
    %v753 = vmul.f32 %v747, %v751
    %755 = vrot.lane.b32.xlu0 %v748, 32
    %v756 = vpop.permute.xlu0 %755
    %v758 = vmul.f32 %v747, %v756
    %760 = vrot.lane.b32.xlu0 %v758, 32
    %v761 = vpop.permute.xlu0 %760
    %v763 = vadd.f32 %v753, %v761
    %v764 = vtanh.pop %v763
    %766 = vrot.lane.b32.xlu0 %v764, 32
    %v767 = vpop.permute.xlu0 %766
    %v769 = vmul.f32 %v747, %v767
    %771 = vrot.lane.b32.xlu0 %v769, 64
    %v772 = vpop.permute.xlu0 %771
    %774 = vst.msk [vmem:[#allocation3] sm:$0xff] %vm69, %v772
    %776 = vrot.lane.b32.xlu0 %v763, 96
    %v777 = vpop.permute.xlu0 %776
    %779 = vst.msk [vmem:[#allocation4] sm:$0xff] %vm69, %v777
    %v780 = vld [vmem:[#allocation3] sm:$0xff]
    %v781 = vld [vmem:[#allocation5] sm:$0xff]
    %v782 = vld [vmem:[#allocation5 + $0x8] sm:$0xff]
    %v783 = vld [vmem:[#allocation5 + $0x10] sm:$0xff]
    %v784 = vld [vmem:[#allocation5 + $0x18] sm:$0xff]
    %v785 = vld [vmem:[#allocation7] sm:$0x1]
    %v787 = vperm.slane %v785, 0
    %v790 = vsel %vm69, %v780, 0
    %792 = vmatpush.msra.mxu0 0.0
    %793 = vmatpush.msra.mxu0 0.0
    %794 = vmatpush.msra.mxu0 0.0
    %795 = vmatpush.msra.mxu0 0.0
    %796 = vmatpush.msra.mxu0 0.0
    %797 = vmatpush.msra.mxu0 0.0
    %798 = vmatpush.msra.mxu0 0.0
    %799 = vmatpush.msra.mxu0 0.0
    %800 = vmatpush.msra.mxu0 0.0
    %801 = vmatpush.msra.mxu0 0.0
    %802 = vmatpush.msra.mxu0 0.0
    %803 = vmatpush.msra.mxu0 0.0
    %804 = vmatpush.msra.mxu0 %v784
    %805 = vmatpush.msra.mxu0 %v783
    %806 = vmatpush.msra.mxu0 %v782
    %807 = vmatpush.msra.mxu0 %v781
    %808 = vmatmul.f32.gmra.mxu0 %v790
    %v809 = vpop.f32.mrf.mxu0
    %v810 = vadd.f32 %v787, %v809
    %811 = vdwg.mxu0
    %v812 = vxor.u32 %v810, 2147483648
    %v813 = vmul.f32 %v812, 1.442695
    %v814 = vpow.pop %v813
    %v815 = vadd.f32 %v814, 1.0
    %v816 = vrcp.pop %v815
    %v817 = vmul.f32 %v815, %v816
    %v818 = vsub.f32 1.0, %v817
    %v819 = vmul.f32 %v816, %v818
    %v820 = vadd.f32 %v816, %v819
    %vm821 = vweird.f32 %v815
    %vm822 = vweird.f32 %v816
    %vm823 = vmor %vm821, %vm822
    %v824 = vsel %vm823, %v816, %v820
    %v825 = vand.u32 2147483647, %v815
    %vm826 = vcmp.eq.f32.partialorder %v825, 8.507059e+37
    %v827 = vand.u32 %v815, 2147483648
    %v828 = vor.u32 1.1754944e-38, %v827
    %v829 = vsel %vm826, %v828, %v824
    %v830 = vmul.f32 1.0, %v829
    %831 = vst [vmem:[%s6] sm:$0xff] %v830
    // Predicated region
    $region34: #{sentiment_lstm_forward.3} parent=1 // pred_check
      _
    $region35: #{sentiment_lstm_forward.3} parent=1 // pred_check_branch
      %833 = sbr.rel (0) target = $region37
    $region36: #{sentiment_lstm_forward.3} parent=1 // pred_region
      _
    $region37: #{sentiment_lstm_forward.3} parent=1 // pred_fallthru
      _
    // Predicated region
    $region38: #{sentiment_lstm_forward.3} parent=1 // pred_check
      _
    $region39: #{sentiment_lstm_forward.3} parent=1 // pred_check_branch
      %835 = sbr.rel (0) target = $region41
    $region40: #{sentiment_lstm_forward.3} parent=1 // pred_region
      _
    $region41: #{sentiment_lstm_forward.3} parent=1 // pred_fallthru
      _
    %836 = vsyncpa [#allocation6], 1
    %837 = vsyncpa [#allocation8], 1

</llo_original>
